<compile_context>
chip_gen: v5e
topology: v5e:2x2
jax: 0.10.0
libtpu: 0.0.40
codegen_flags: <defaults>
</compile_context>

<pallas_src>
import numpy as np
import jax
import jax.numpy as jnp
from jax import lax
from jax.experimental import pallas as pl
from jax.experimental.pallas import tpu as pltpu


def _lstm_fc_kernel(xg0_ref, lens_ref,
                    whh0_ref, wih1_ref, whh1_ref, b1_ref,
                    wfc_ref, bfc_ref,
                    out_ref):
    T, B, _ = xg0_ref.shape
    H = whh0_ref.shape[0]

    # Hoist all weight / length loads out of the time loop.
    whh0 = whh0_ref[...]        # (H, 4H)
    wih1 = wih1_ref[...]        # (H, 4H)
    whh1 = whh1_ref[...]        # (H, 4H)
    b1 = b1_ref[...]            # (1, 4H)
    wfc = wfc_ref[...]          # (H, F_pad)
    bfc = bfc_ref[...]          # (1, F_pad)
    lens = lens_ref[...]        # (B, 1) int32

    def cell(gates, c):
        # One full-width sigmoid over (B, 4H); tanh only on the g slice.
        sg = jax.nn.sigmoid(gates)
        i = sg[:, 0 * H:1 * H]
        f = sg[:, 1 * H:2 * H]
        o = sg[:, 3 * H:4 * H]
        g = jnp.tanh(gates[:, 2 * H:3 * H])
        c_new = f * c + i * g
        h_new = o * jnp.tanh(c_new)
        return h_new, c_new

    def step(t, carry):
        h0, c0, h1, c1 = carry
        m = jnp.where(lens > t, 1.0, 0.0).astype(jnp.float32)      # (B, 1)

        # ---- layer 0 (input projection precomputed; only h @ Whh0 here) ----
        gates0 = xg0_ref[t] + jnp.dot(h0, whh0,
                                      preferred_element_type=jnp.float32)
        h0u, c0u = cell(gates0, c0)
        h0n = m * h0u + (1.0 - m) * h0
        c0n = m * c0u + (1.0 - m) * c0

        # ---- layer 1 (inter-layer dropout is identity in eval mode) ----
        gates1 = (jnp.dot(h0n, wih1, preferred_element_type=jnp.float32)
                  + jnp.dot(h1, whh1, preferred_element_type=jnp.float32)
                  + b1)
        h1u, c1u = cell(gates1, c1)
        h1n = m * h1u + (1.0 - m) * h1
        c1n = m * c1u + (1.0 - m) * c1

        # ---- fc2 on padded (zero-filled) LSTM output; (B, 128) lane-dense store
        lstm_out = m * h1u                      # zeros at padded steps
        out_ref[t] = (jnp.dot(lstm_out, wfc,
                              preferred_element_type=jnp.float32) + bfc)
        return h0n, c0n, h1n, c1n

    z = jnp.zeros((B, H), jnp.float32)
    lax.fori_loop(0, T, step, (z, z, z, z), unroll=True)


def init_params(key, input_size, hidden_size=32, out_features=11):
    H = hidden_size
    ks = jax.random.split(key, 10)
    bound = 1.0 / np.sqrt(H)
    u = lambda k, s: jax.random.uniform(k, s, jnp.float32, -bound, bound)
    return dict(
        wih0=u(ks[0], (4 * H, input_size)),
        whh0=u(ks[1], (4 * H, H)),
        bih0=u(ks[2], (4 * H,)),
        bhh0=u(ks[3], (4 * H,)),
        wih1=u(ks[4], (4 * H, H)),
        whh1=u(ks[5], (4 * H, H)),
        bih1=u(ks[6], (4 * H,)),
        bhh1=u(ks[7], (4 * H,)),
        wfc=u(ks[8], (out_features, H)),
        bfc=u(ks[9], (out_features,)),
    )


def seq2seq_forward(params, padded_sequence, input_lengths):
    """padded_sequence: (B, T, D) float32 (batch_first).  Returns (B, T_max, 11)."""
    lengths = np.asarray(input_lengths, dtype=np.int32)
    T_max = int(lengths.max())                   # pad_packed truncates to max length
    x = jnp.asarray(padded_sequence, jnp.float32)[:, :T_max, :]
    B, T, D = x.shape
    H = params["whh0"].shape[1]
    F = params["wfc"].shape[0]

    # Pad batch to sublane multiple (8); padded rows get length 0 (fully masked).
    B_pad = int(-(-B // 8) * 8)
    if B_pad != B:
        x = jnp.pad(x, ((0, B_pad - B), (0, 0), (0, 0)))
    lens_pad = np.zeros((B_pad,), np.int32)
    lens_pad[:B] = lengths
    lens_col = jnp.asarray(lens_pad).reshape(B_pad, 1)   # (B_pad, 1) int32

    x_tbd = jnp.transpose(x, (1, 0, 2))          # (T, B_pad, D), time-major

    # Pre-transpose weights for (B, K) @ (K, N) matmuls; fold the two biases.
    wih0T = jnp.transpose(params["wih0"])        # (D, 4H)
    whh0T = jnp.transpose(params["whh0"])        # (H, 4H)
    b0 = (params["bih0"] + params["bhh0"]).reshape(1, 4 * H)
    wih1T = jnp.transpose(params["wih1"])        # (H, 4H)
    whh1T = jnp.transpose(params["whh1"])        # (H, 4H)
    b1 = (params["bih1"] + params["bhh1"]).reshape(1, 4 * H)

    # Pad FC output dim from 11 to 128 lanes (unmasked stores); slice back after.
    F_pad = 128
    wfcT = jnp.zeros((H, F_pad), jnp.float32).at[:, :F].set(jnp.transpose(params["wfc"]))
    bfc = jnp.zeros((1, F_pad), jnp.float32).at[:, :F].set(params["bfc"])

    # Hoist layer-0 input projection out of the recurrence: one large matmul
    # over all timesteps (fully parallel in t), done in XLA.
    xg0 = jnp.einsum("tbd,dg->tbg", x_tbd, wih0T) + b0    # (T, B_pad, 4H)

    full = lambda shape: pl.BlockSpec(shape, lambda i: (0,) * len(shape))

    out_tbf = pl.pallas_call(
        _lstm_fc_kernel,
        out_shape=jax.ShapeDtypeStruct((T, B_pad, F_pad), jnp.float32),
        grid_spec=pltpu.PrefetchScalarGridSpec(
            num_scalar_prefetch=0,
            grid=(1,),
            in_specs=[
                full((T, B_pad, 4 * H)),          # precomputed layer-0 gates
                full((B_pad, 1)),                 # lengths column
                full((H, 4 * H)),                 # whh0
                full((H, 4 * H)),                 # wih1
                full((H, 4 * H)),                 # whh1
                full((1, 4 * H)),                 # b1
                full((H, F_pad)),                 # wfc (padded)
                full((1, F_pad)),                 # bfc (padded)
            ],
            out_specs=full((T, B_pad, F_pad)),
        ),
        compiler_params=pltpu.CompilerParams(
            dimension_semantics=("arbitrary",)),
    )(xg0, lens_col, whh0T, wih1T, whh1T, b1, wfcT, bfc)

    # (T, B_pad, F_pad) -> (B, T_max, 11)
    return jnp.transpose(out_tbf[:, :B, :F], (1, 0, 2))


if __name__ == "__main__":
    key = jax.random.PRNGKey(0)
    k_param, k_x = jax.random.split(key)

    B, T, D, H = 4, 8, 16, 32
    params = init_params(k_param, input_size=D, hidden_size=H)

    padded_sequence = jax.random.normal(k_x, (B, T, D), jnp.float32)
    input_lengths = [8, 7, 5, 3]                 # sorted descending (enforce_sorted)

    out = seq2seq_forward(params, padded_sequence, input_lengths)
    out = jax.block_until_ready(out)
    assert out.shape == (B, max(input_lengths), 11), out.shape
    assert bool(jnp.all(jnp.isfinite(out)))
    print("KERNEL_OK")
</pallas_src>

<mosaic_0001>
module attributes {stable_mosaic.version = 11 : i64} {
  func.func @_lstm_fc_kernel(%arg0: i32, %arg1: memref<8x8x128xf32, #tpu.memory_space<vmem>>, %arg2: memref<8x1xi32, #tpu.memory_space<vmem>>, %arg3: memref<32x128xf32, #tpu.memory_space<vmem>>, %arg4: memref<32x128xf32, #tpu.memory_space<vmem>>, %arg5: memref<32x128xf32, #tpu.memory_space<vmem>>, %arg6: memref<1x128xf32, #tpu.memory_space<vmem>>, %arg7: memref<32x128xf32, #tpu.memory_space<vmem>>, %arg8: memref<1x128xf32, #tpu.memory_space<vmem>>, %arg9: memref<8x8x128xf32, #tpu.memory_space<vmem>>) attributes {dimension_semantics = [#tpu.dimension_semantics<arbitrary>], iteration_bounds = array<i64: 1>, scalar_prefetch = 0 : i64, scratch_operands = 0 : i64, tpu.core_type = #tpu.core_type<tc>, window_params = [{pipeline_mode = #tpu.pipeline_mode<synchronous>, transform_indices = @transform_0, window_bounds = array<i64: 8, 8, 128>}, {pipeline_mode = #tpu.pipeline_mode<synchronous>, transform_indices = @transform_1, window_bounds = array<i64: 8, 1>}, {pipeline_mode = #tpu.pipeline_mode<synchronous>, transform_indices = @transform_2, window_bounds = array<i64: 32, 128>}, {pipeline_mode = #tpu.pipeline_mode<synchronous>, transform_indices = @transform_3, window_bounds = array<i64: 32, 128>}, {pipeline_mode = #tpu.pipeline_mode<synchronous>, transform_indices = @transform_4, window_bounds = array<i64: 32, 128>}, {pipeline_mode = #tpu.pipeline_mode<synchronous>, transform_indices = @transform_5, window_bounds = array<i64: 1, 128>}, {pipeline_mode = #tpu.pipeline_mode<synchronous>, transform_indices = @transform_6, window_bounds = array<i64: 32, 128>}, {pipeline_mode = #tpu.pipeline_mode<synchronous>, transform_indices = @transform_7, window_bounds = array<i64: 1, 128>}, {pipeline_mode = #tpu.pipeline_mode<synchronous>, transform_indices = @transform_8, window_bounds = array<i64: 8, 8, 128>}]} {
    %c0 = arith.constant 0 : index
    %c0_0 = arith.constant 0 : index
    %0 = vector.load %arg3[%c0, %c0_0] : memref<32x128xf32, #tpu.memory_space<vmem>>, vector<32x128xf32>
    %c0_1 = arith.constant 0 : index
    %c0_2 = arith.constant 0 : index
    %1 = vector.load %arg4[%c0_1, %c0_2] : memref<32x128xf32, #tpu.memory_space<vmem>>, vector<32x128xf32>
    %c0_3 = arith.constant 0 : index
    %c0_4 = arith.constant 0 : index
    %2 = vector.load %arg5[%c0_3, %c0_4] : memref<32x128xf32, #tpu.memory_space<vmem>>, vector<32x128xf32>
    %c0_5 = arith.constant 0 : index
    %c0_6 = arith.constant 0 : index
    %3 = vector.load %arg6[%c0_5, %c0_6] : memref<1x128xf32, #tpu.memory_space<vmem>>, vector<1x128xf32>
    %c0_7 = arith.constant 0 : index
    %c0_8 = arith.constant 0 : index
    %4 = vector.load %arg7[%c0_7, %c0_8] : memref<32x128xf32, #tpu.memory_space<vmem>>, vector<32x128xf32>
    %c0_9 = arith.constant 0 : index
    %c0_10 = arith.constant 0 : index
    %5 = vector.load %arg8[%c0_9, %c0_10] : memref<1x128xf32, #tpu.memory_space<vmem>>, vector<1x128xf32>
    %c0_11 = arith.constant 0 : index
    %c0_12 = arith.constant 0 : index
    %6 = vector.load %arg2[%c0_11, %c0_12] : memref<8x1xi32, #tpu.memory_space<vmem>>, vector<8x1xi32>
    %cst = arith.constant 0.000000e+00 : f32
    %7 = vector.broadcast %cst : f32 to vector<8x32xf32>
    %c0_i32 = arith.constant 0 : i32
    %8 = vector.broadcast %c0_i32 : i32 to vector<8x1xi32>
    %9 = arith.cmpi sgt, %6, %8 : vector<8x1xi32>
    %cst_13 = arith.constant 1.000000e+00 : f32
    %cst_14 = arith.constant 0.000000e+00 : f32
    %10 = vector.broadcast %cst_13 : f32 to vector<8x1xf32>
    %11 = vector.broadcast %cst_14 : f32 to vector<8x1xf32>
    %12 = arith.select %9, %10, %11 : vector<8x1xi1>, vector<8x1xf32>
    %13 = arith.index_cast %c0_i32 : i32 to index
    %c0_15 = arith.constant 0 : index
    %c0_16 = arith.constant 0 : index
    %14 = vector.load %arg1[%13, %c0_15, %c0_16] : memref<8x8x128xf32, #tpu.memory_space<vmem>>, vector<1x8x128xf32>
    %15 = vector.shape_cast %14 : vector<1x8x128xf32> to vector<8x128xf32>
    %cst_17 = arith.constant dense<0.000000e+00> : vector<8x128xf32>
    %16 = tpu.matmul %7, %0, %cst_17 {dimension_numbers = #tpu.dot_dimension_numbers<[1], [0], [0], [1], [0, 0, 1, 1], [], []>} : vector<8x32xf32>, vector<32x128xf32>, vector<8x128xf32> -> vector<8x128xf32>
    %17 = arith.addf %15, %16 : vector<8x128xf32>
    %18 = arith.negf %17 : vector<8x128xf32>
    %19 = math.exp %18 : vector<8x128xf32>
    %cst_18 = arith.constant 1.000000e+00 : f32
    %20 = vector.broadcast %cst_18 : f32 to vector<8x128xf32>
    %21 = arith.addf %20, %19 : vector<8x128xf32>
    %22 = arith.divf %20, %21 : vector<8x128xf32>
    %23 = vector.extract_strided_slice %22 {offsets = [0, 0], sizes = [8, 32], strides = [1, 1]} : vector<8x128xf32> to vector<8x32xf32>
    %24 = vector.extract_strided_slice %22 {offsets = [0, 32], sizes = [8, 32], strides = [1, 1]} : vector<8x128xf32> to vector<8x32xf32>
    %25 = vector.extract_strided_slice %22 {offsets = [0, 96], sizes = [8, 32], strides = [1, 1]} : vector<8x128xf32> to vector<8x32xf32>
    %26 = vector.extract_strided_slice %17 {offsets = [0, 64], sizes = [8, 32], strides = [1, 1]} : vector<8x128xf32> to vector<8x32xf32>
    %27 = math.tanh %26 : vector<8x32xf32>
    %28 = arith.mulf %24, %7 : vector<8x32xf32>
    %29 = arith.mulf %23, %27 : vector<8x32xf32>
    %30 = arith.addf %28, %29 : vector<8x32xf32>
    %31 = math.tanh %30 : vector<8x32xf32>
    %32 = arith.mulf %25, %31 : vector<8x32xf32>
    %33 = vector.broadcast %12 : vector<8x1xf32> to vector<8x32xf32>
    %34 = arith.mulf %33, %32 : vector<8x32xf32>
    %cst_19 = arith.constant 1.000000e+00 : f32
    %35 = vector.broadcast %cst_19 : f32 to vector<8x1xf32>
    %36 = arith.subf %35, %12 : vector<8x1xf32>
    %37 = vector.broadcast %36 : vector<8x1xf32> to vector<8x32xf32>
    %38 = arith.mulf %37, %7 : vector<8x32xf32>
    %39 = arith.addf %34, %38 : vector<8x32xf32>
    %40 = vector.broadcast %12 : vector<8x1xf32> to vector<8x32xf32>
    %41 = arith.mulf %40, %30 : vector<8x32xf32>
    %cst_20 = arith.constant 1.000000e+00 : f32
    %42 = vector.broadcast %cst_20 : f32 to vector<8x1xf32>
    %43 = arith.subf %42, %12 : vector<8x1xf32>
    %44 = vector.broadcast %43 : vector<8x1xf32> to vector<8x32xf32>
    %45 = arith.mulf %44, %7 : vector<8x32xf32>
    %46 = arith.addf %41, %45 : vector<8x32xf32>
    %cst_21 = arith.constant dense<0.000000e+00> : vector<8x128xf32>
    %47 = tpu.matmul %39, %1, %cst_21 {dimension_numbers = #tpu.dot_dimension_numbers<[1], [0], [0], [1], [0, 0, 1, 1], [], []>} : vector<8x32xf32>, vector<32x128xf32>, vector<8x128xf32> -> vector<8x128xf32>
    %cst_22 = arith.constant dense<0.000000e+00> : vector<8x128xf32>
    %48 = tpu.matmul %7, %2, %cst_22 {dimension_numbers = #tpu.dot_dimension_numbers<[1], [0], [0], [1], [0, 0, 1, 1], [], []>} : vector<8x32xf32>, vector<32x128xf32>, vector<8x128xf32> -> vector<8x128xf32>
    %49 = arith.addf %47, %48 : vector<8x128xf32>
    %50 = vector.broadcast %3 : vector<1x128xf32> to vector<8x128xf32>
    %51 = arith.addf %49, %50 : vector<8x128xf32>
    %52 = arith.negf %51 : vector<8x128xf32>
    %53 = math.exp %52 : vector<8x128xf32>
    %cst_23 = arith.constant 1.000000e+00 : f32
    %54 = vector.broadcast %cst_23 : f32 to vector<8x128xf32>
    %55 = arith.addf %54, %53 : vector<8x128xf32>
    %56 = arith.divf %54, %55 : vector<8x128xf32>
    %57 = vector.extract_strided_slice %56 {offsets = [0, 0], sizes = [8, 32], strides = [1, 1]} : vector<8x128xf32> to vector<8x32xf32>
    %58 = vector.extract_strided_slice %56 {offsets = [0, 32], sizes = [8, 32], strides = [1, 1]} : vector<8x128xf32> to vector<8x32xf32>
    %59 = vector.extract_strided_slice %56 {offsets = [0, 96], sizes = [8, 32], strides = [1, 1]} : vector<8x128xf32> to vector<8x32xf32>
    %60 = vector.extract_strided_slice %51 {offsets = [0, 64], sizes = [8, 32], strides = [1, 1]} : vector<8x128xf32> to vector<8x32xf32>
    %61 = math.tanh %60 : vector<8x32xf32>
    %62 = arith.mulf %58, %7 : vector<8x32xf32>
    %63 = arith.mulf %57, %61 : vector<8x32xf32>
    %64 = arith.addf %62, %63 : vector<8x32xf32>
    %65 = math.tanh %64 : vector<8x32xf32>
    %66 = arith.mulf %59, %65 : vector<8x32xf32>
    %67 = vector.broadcast %12 : vector<8x1xf32> to vector<8x32xf32>
    %68 = arith.mulf %67, %66 : vector<8x32xf32>
    %cst_24 = arith.constant 1.000000e+00 : f32
    %69 = vector.broadcast %cst_24 : f32 to vector<8x1xf32>
    %70 = arith.subf %69, %12 : vector<8x1xf32>
    %71 = vector.broadcast %70 : vector<8x1xf32> to vector<8x32xf32>
    %72 = arith.mulf %71, %7 : vector<8x32xf32>
    %73 = arith.addf %68, %72 : vector<8x32xf32>
    %74 = vector.broadcast %12 : vector<8x1xf32> to vector<8x32xf32>
    %75 = arith.mulf %74, %64 : vector<8x32xf32>
    %cst_25 = arith.constant 1.000000e+00 : f32
    %76 = vector.broadcast %cst_25 : f32 to vector<8x1xf32>
    %77 = arith.subf %76, %12 : vector<8x1xf32>
    %78 = vector.broadcast %77 : vector<8x1xf32> to vector<8x32xf32>
    %79 = arith.mulf %78, %7 : vector<8x32xf32>
    %80 = arith.addf %75, %79 : vector<8x32xf32>
    %81 = vector.broadcast %12 : vector<8x1xf32> to vector<8x32xf32>
    %82 = arith.mulf %81, %66 : vector<8x32xf32>
    %cst_26 = arith.constant dense<0.000000e+00> : vector<8x128xf32>
    %83 = tpu.matmul %82, %4, %cst_26 {dimension_numbers = #tpu.dot_dimension_numbers<[1], [0], [0], [1], [0, 0, 1, 1], [], []>} : vector<8x32xf32>, vector<32x128xf32>, vector<8x128xf32> -> vector<8x128xf32>
    %84 = vector.broadcast %5 : vector<1x128xf32> to vector<8x128xf32>
    %85 = arith.addf %83, %84 : vector<8x128xf32>
    %86 = arith.index_cast %c0_i32 : i32 to index
    %c0_27 = arith.constant 0 : index
    %c0_28 = arith.constant 0 : index
    %87 = vector.load %arg9[%86, %c0_27, %c0_28] : memref<8x8x128xf32, #tpu.memory_space<vmem>>, vector<1x8x128xf32>
    %88 = vector.shape_cast %87 : vector<1x8x128xf32> to vector<8x128xf32>
    %89 = vector.shape_cast %85 : vector<8x128xf32> to vector<1x8x128xf32>
    tpu.vector_store %arg9[%86, %c0_27, %c0_28], %89 {strides = array<i32>} : memref<8x8x128xf32, #tpu.memory_space<vmem>>, vector<1x8x128xf32>,
    %c1_i32 = arith.constant 1 : i32
    %90 = vector.broadcast %c1_i32 : i32 to vector<8x1xi32>
    %91 = arith.cmpi sgt, %6, %90 : vector<8x1xi32>
    %cst_29 = arith.constant 1.000000e+00 : f32
    %cst_30 = arith.constant 0.000000e+00 : f32
    %92 = vector.broadcast %cst_29 : f32 to vector<8x1xf32>
    %93 = vector.broadcast %cst_30 : f32 to vector<8x1xf32>
    %94 = arith.select %91, %92, %93 : vector<8x1xi1>, vector<8x1xf32>
    %95 = arith.index_cast %c1_i32 : i32 to index
    %c0_31 = arith.constant 0 : index
    %c0_32 = arith.constant 0 : index
    %96 = vector.load %arg1[%95, %c0_31, %c0_32] : memref<8x8x128xf32, #tpu.memory_space<vmem>>, vector<1x8x128xf32>
    %97 = vector.shape_cast %96 : vector<1x8x128xf32> to vector<8x128xf32>
    %cst_33 = arith.constant dense<0.000000e+00> : vector<8x128xf32>
    %98 = tpu.matmul %39, %0, %cst_33 {dimension_numbers = #tpu.dot_dimension_numbers<[1], [0], [0], [1], [0, 0, 1, 1], [], []>} : vector<8x32xf32>, vector<32x128xf32>, vector<8x128xf32> -> vector<8x128xf32>
    %99 = arith.addf %97, %98 : vector<8x128xf32>
    %100 = arith.negf %99 : vector<8x128xf32>
    %101 = math.exp %100 : vector<8x128xf32>
    %cst_34 = arith.constant 1.000000e+00 : f32
    %102 = vector.broadcast %cst_34 : f32 to vector<8x128xf32>
    %103 = arith.addf %102, %101 : vector<8x128xf32>
    %104 = arith.divf %102, %103 : vector<8x128xf32>
    %105 = vector.extract_strided_slice %104 {offsets = [0, 0], sizes = [8, 32], strides = [1, 1]} : vector<8x128xf32> to vector<8x32xf32>
    %106 = vector.extract_strided_slice %104 {offsets = [0, 32], sizes = [8, 32], strides = [1, 1]} : vector<8x128xf32> to vector<8x32xf32>
    %107 = vector.extract_strided_slice %104 {offsets = [0, 96], sizes = [8, 32], strides = [1, 1]} : vector<8x128xf32> to vector<8x32xf32>
    %108 = vector.extract_strided_slice %99 {offsets = [0, 64], sizes = [8, 32], strides = [1, 1]} : vector<8x128xf32> to vector<8x32xf32>
    %109 = math.tanh %108 : vector<8x32xf32>
    %110 = arith.mulf %106, %46 : vector<8x32xf32>
    %111 = arith.mulf %105, %109 : vector<8x32xf32>
    %112 = arith.addf %110, %111 : vector<8x32xf32>
    %113 = math.tanh %112 : vector<8x32xf32>
    %114 = arith.mulf %107, %113 : vector<8x32xf32>
    %115 = vector.broadcast %94 : vector<8x1xf32> to vector<8x32xf32>
    %116 = arith.mulf %115, %114 : vector<8x32xf32>
    %cst_35 = arith.constant 1.000000e+00 : f32
    %117 = vector.broadcast %cst_35 : f32 to vector<8x1xf32>
    %118 = arith.subf %117, %94 : vector<8x1xf32>
    %119 = vector.broadcast %118 : vector<8x1xf32> to vector<8x32xf32>
    %120 = arith.mulf %119, %39 : vector<8x32xf32>
    %121 = arith.addf %116, %120 : vector<8x32xf32>
    %122 = vector.broadcast %94 : vector<8x1xf32> to vector<8x32xf32>
    %123 = arith.mulf %122, %112 : vector<8x32xf32>
    %cst_36 = arith.constant 1.000000e+00 : f32
    %124 = vector.broadcast %cst_36 : f32 to vector<8x1xf32>
    %125 = arith.subf %124, %94 : vector<8x1xf32>
    %126 = vector.broadcast %125 : vector<8x1xf32> to vector<8x32xf32>
    %127 = arith.mulf %126, %46 : vector<8x32xf32>
    %128 = arith.addf %123, %127 : vector<8x32xf32>
    %cst_37 = arith.constant dense<0.000000e+00> : vector<8x128xf32>
    %129 = tpu.matmul %121, %1, %cst_37 {dimension_numbers = #tpu.dot_dimension_numbers<[1], [0], [0], [1], [0, 0, 1, 1], [], []>} : vector<8x32xf32>, vector<32x128xf32>, vector<8x128xf32> -> vector<8x128xf32>
    %cst_38 = arith.constant dense<0.000000e+00> : vector<8x128xf32>
    %130 = tpu.matmul %73, %2, %cst_38 {dimension_numbers = #tpu.dot_dimension_numbers<[1], [0], [0], [1], [0, 0, 1, 1], [], []>} : vector<8x32xf32>, vector<32x128xf32>, vector<8x128xf32> -> vector<8x128xf32>
    %131 = arith.addf %129, %130 : vector<8x128xf32>
    %132 = vector.broadcast %3 : vector<1x128xf32> to vector<8x128xf32>
    %133 = arith.addf %131, %132 : vector<8x128xf32>
    %134 = arith.negf %133 : vector<8x128xf32>
    %135 = math.exp %134 : vector<8x128xf32>
    %cst_39 = arith.constant 1.000000e+00 : f32
    %136 = vector.broadcast %cst_39 : f32 to vector<8x128xf32>
    %137 = arith.addf %136, %135 : vector<8x128xf32>
    %138 = arith.divf %136, %137 : vector<8x128xf32>
    %139 = vector.extract_strided_slice %138 {offsets = [0, 0], sizes = [8, 32], strides = [1, 1]} : vector<8x128xf32> to vector<8x32xf32>
    %140 = vector.extract_strided_slice %138 {offsets = [0, 32], sizes = [8, 32], strides = [1, 1]} : vector<8x128xf32> to vector<8x32xf32>
    %141 = vector.extract_strided_slice %138 {offsets = [0, 96], sizes = [8, 32], strides = [1, 1]} : vector<8x128xf32> to vector<8x32xf32>
    %142 = vector.extract_strided_slice %133 {offsets = [0, 64], sizes = [8, 32], strides = [1, 1]} : vector<8x128xf32> to vector<8x32xf32>
    %143 = math.tanh %142 : vector<8x32xf32>
    %144 = arith.mulf %140, %80 : vector<8x32xf32>
    %145 = arith.mulf %139, %143 : vector<8x32xf32>
    %146 = arith.addf %144, %145 : vector<8x32xf32>
    %147 = math.tanh %146 : vector<8x32xf32>
    %148 = arith.mulf %141, %147 : vector<8x32xf32>
    %149 = vector.broadcast %94 : vector<8x1xf32> to vector<8x32xf32>
    %150 = arith.mulf %149, %148 : vector<8x32xf32>
    %cst_40 = arith.constant 1.000000e+00 : f32
    %151 = vector.broadcast %cst_40 : f32 to vector<8x1xf32>
    %152 = arith.subf %151, %94 : vector<8x1xf32>
    %153 = vector.broadcast %152 : vector<8x1xf32> to vector<8x32xf32>
    %154 = arith.mulf %153, %73 : vector<8x32xf32>
    %155 = arith.addf %150, %154 : vector<8x32xf32>
    %156 = vector.broadcast %94 : vector<8x1xf32> to vector<8x32xf32>
    %157 = arith.mulf %156, %146 : vector<8x32xf32>
    %cst_41 = arith.constant 1.000000e+00 : f32
    %158 = vector.broadcast %cst_41 : f32 to vector<8x1xf32>
    %159 = arith.subf %158, %94 : vector<8x1xf32>
    %160 = vector.broadcast %159 : vector<8x1xf32> to vector<8x32xf32>
    %161 = arith.mulf %160, %80 : vector<8x32xf32>
    %162 = arith.addf %157, %161 : vector<8x32xf32>
    %163 = vector.broadcast %94 : vector<8x1xf32> to vector<8x32xf32>
    %164 = arith.mulf %163, %148 : vector<8x32xf32>
    %cst_42 = arith.constant dense<0.000000e+00> : vector<8x128xf32>
    %165 = tpu.matmul %164, %4, %cst_42 {dimension_numbers = #tpu.dot_dimension_numbers<[1], [0], [0], [1], [0, 0, 1, 1], [], []>} : vector<8x32xf32>, vector<32x128xf32>, vector<8x128xf32> -> vector<8x128xf32>
    %166 = vector.broadcast %5 : vector<1x128xf32> to vector<8x128xf32>
    %167 = arith.addf %165, %166 : vector<8x128xf32>
    %168 = arith.index_cast %c1_i32 : i32 to index
    %c0_43 = arith.constant 0 : index
    %c0_44 = arith.constant 0 : index
    %169 = vector.load %arg9[%168, %c0_43, %c0_44] : memref<8x8x128xf32, #tpu.memory_space<vmem>>, vector<1x8x128xf32>
    %170 = vector.shape_cast %169 : vector<1x8x128xf32> to vector<8x128xf32>
    %171 = vector.shape_cast %167 : vector<8x128xf32> to vector<1x8x128xf32>
    tpu.vector_store %arg9[%168, %c0_43, %c0_44], %171 {strides = array<i32>} : memref<8x8x128xf32, #tpu.memory_space<vmem>>, vector<1x8x128xf32>,
    %c2_i32 = arith.constant 2 : i32
    %172 = vector.broadcast %c2_i32 : i32 to vector<8x1xi32>
    %173 = arith.cmpi sgt, %6, %172 : vector<8x1xi32>
    %cst_45 = arith.constant 1.000000e+00 : f32
    %cst_46 = arith.constant 0.000000e+00 : f32
    %174 = vector.broadcast %cst_45 : f32 to vector<8x1xf32>
    %175 = vector.broadcast %cst_46 : f32 to vector<8x1xf32>
    %176 = arith.select %173, %174, %175 : vector<8x1xi1>, vector<8x1xf32>
    %177 = arith.index_cast %c2_i32 : i32 to index
    %c0_47 = arith.constant 0 : index
    %c0_48 = arith.constant 0 : index
    %178 = vector.load %arg1[%177, %c0_47, %c0_48] : memref<8x8x128xf32, #tpu.memory_space<vmem>>, vector<1x8x128xf32>
    %179 = vector.shape_cast %178 : vector<1x8x128xf32> to vector<8x128xf32>
    %cst_49 = arith.constant dense<0.000000e+00> : vector<8x128xf32>
    %180 = tpu.matmul %121, %0, %cst_49 {dimension_numbers = #tpu.dot_dimension_numbers<[1], [0], [0], [1], [0, 0, 1, 1], [], []>} : vector<8x32xf32>, vector<32x128xf32>, vector<8x128xf32> -> vector<8x128xf32>
    %181 = arith.addf %179, %180 : vector<8x128xf32>
    %182 = arith.negf %181 : vector<8x128xf32>
    %183 = math.exp %182 : vector<8x128xf32>
    %cst_50 = arith.constant 1.000000e+00 : f32
    %184 = vector.broadcast %cst_50 : f32 to vector<8x128xf32>
    %185 = arith.addf %184, %183 : vector<8x128xf32>
    %186 = arith.divf %184, %185 : vector<8x128xf32>
    %187 = vector.extract_strided_slice %186 {offsets = [0, 0], sizes = [8, 32], strides = [1, 1]} : vector<8x128xf32> to vector<8x32xf32>
    %188 = vector.extract_strided_slice %186 {offsets = [0, 32], sizes = [8, 32], strides = [1, 1]} : vector<8x128xf32> to vector<8x32xf32>
    %189 = vector.extract_strided_slice %186 {offsets = [0, 96], sizes = [8, 32], strides = [1, 1]} : vector<8x128xf32> to vector<8x32xf32>
    %190 = vector.extract_strided_slice %181 {offsets = [0, 64], sizes = [8, 32], strides = [1, 1]} : vector<8x128xf32> to vector<8x32xf32>
    %191 = math.tanh %190 : vector<8x32xf32>
    %192 = arith.mulf %188, %128 : vector<8x32xf32>
    %193 = arith.mulf %187, %191 : vector<8x32xf32>
    %194 = arith.addf %192, %193 : vector<8x32xf32>
    %195 = math.tanh %194 : vector<8x32xf32>
    %196 = arith.mulf %189, %195 : vector<8x32xf32>
    %197 = vector.broadcast %176 : vector<8x1xf32> to vector<8x32xf32>
    %198 = arith.mulf %197, %196 : vector<8x32xf32>
    %cst_51 = arith.constant 1.000000e+00 : f32
    %199 = vector.broadcast %cst_51 : f32 to vector<8x1xf32>
    %200 = arith.subf %199, %176 : vector<8x1xf32>
    %201 = vector.broadcast %200 : vector<8x1xf32> to vector<8x32xf32>
    %202 = arith.mulf %201, %121 : vector<8x32xf32>
    %203 = arith.addf %198, %202 : vector<8x32xf32>
    %204 = vector.broadcast %176 : vector<8x1xf32> to vector<8x32xf32>
    %205 = arith.mulf %204, %194 : vector<8x32xf32>
    %cst_52 = arith.constant 1.000000e+00 : f32
    %206 = vector.broadcast %cst_52 : f32 to vector<8x1xf32>
    %207 = arith.subf %206, %176 : vector<8x1xf32>
    %208 = vector.broadcast %207 : vector<8x1xf32> to vector<8x32xf32>
    %209 = arith.mulf %208, %128 : vector<8x32xf32>
    %210 = arith.addf %205, %209 : vector<8x32xf32>
    %cst_53 = arith.constant dense<0.000000e+00> : vector<8x128xf32>
    %211 = tpu.matmul %203, %1, %cst_53 {dimension_numbers = #tpu.dot_dimension_numbers<[1], [0], [0], [1], [0, 0, 1, 1], [], []>} : vector<8x32xf32>, vector<32x128xf32>, vector<8x128xf32> -> vector<8x128xf32>
    %cst_54 = arith.constant dense<0.000000e+00> : vector<8x128xf32>
    %212 = tpu.matmul %155, %2, %cst_54 {dimension_numbers = #tpu.dot_dimension_numbers<[1], [0], [0], [1], [0, 0, 1, 1], [], []>} : vector<8x32xf32>, vector<32x128xf32>, vector<8x128xf32> -> vector<8x128xf32>
    %213 = arith.addf %211, %212 : vector<8x128xf32>
    %214 = vector.broadcast %3 : vector<1x128xf32> to vector<8x128xf32>
    %215 = arith.addf %213, %214 : vector<8x128xf32>
    %216 = arith.negf %215 : vector<8x128xf32>
    %217 = math.exp %216 : vector<8x128xf32>
    %cst_55 = arith.constant 1.000000e+00 : f32
    %218 = vector.broadcast %cst_55 : f32 to vector<8x128xf32>
    %219 = arith.addf %218, %217 : vector<8x128xf32>
    %220 = arith.divf %218, %219 : vector<8x128xf32>
    %221 = vector.extract_strided_slice %220 {offsets = [0, 0], sizes = [8, 32], strides = [1, 1]} : vector<8x128xf32> to vector<8x32xf32>
    %222 = vector.extract_strided_slice %220 {offsets = [0, 32], sizes = [8, 32], strides = [1, 1]} : vector<8x128xf32> to vector<8x32xf32>
    %223 = vector.extract_strided_slice %220 {offsets = [0, 96], sizes = [8, 32], strides = [1, 1]} : vector<8x128xf32> to vector<8x32xf32>
    %224 = vector.extract_strided_slice %215 {offsets = [0, 64], sizes = [8, 32], strides = [1, 1]} : vector<8x128xf32> to vector<8x32xf32>
    %225 = math.tanh %224 : vector<8x32xf32>
    %226 = arith.mulf %222, %162 : vector<8x32xf32>
    %227 = arith.mulf %221, %225 : vector<8x32xf32>
    %228 = arith.addf %226, %227 : vector<8x32xf32>
    %229 = math.tanh %228 : vector<8x32xf32>
    %230 = arith.mulf %223, %229 : vector<8x32xf32>
    %231 = vector.broadcast %176 : vector<8x1xf32> to vector<8x32xf32>
    %232 = arith.mulf %231, %230 : vector<8x32xf32>
    %cst_56 = arith.constant 1.000000e+00 : f32
    %233 = vector.broadcast %cst_56 : f32 to vector<8x1xf32>
    %234 = arith.subf %233, %176 : vector<8x1xf32>
    %235 = vector.broadcast %234 : vector<8x1xf32> to vector<8x32xf32>
    %236 = arith.mulf %235, %155 : vector<8x32xf32>
    %237 = arith.addf %232, %236 : vector<8x32xf32>
    %238 = vector.broadcast %176 : vector<8x1xf32> to vector<8x32xf32>
    %239 = arith.mulf %238, %228 : vector<8x32xf32>
    %cst_57 = arith.constant 1.000000e+00 : f32
    %240 = vector.broadcast %cst_57 : f32 to vector<8x1xf32>
    %241 = arith.subf %240, %176 : vector<8x1xf32>
    %242 = vector.broadcast %241 : vector<8x1xf32> to vector<8x32xf32>
    %243 = arith.mulf %242, %162 : vector<8x32xf32>
    %244 = arith.addf %239, %243 : vector<8x32xf32>
    %245 = vector.broadcast %176 : vector<8x1xf32> to vector<8x32xf32>
    %246 = arith.mulf %245, %230 : vector<8x32xf32>
    %cst_58 = arith.constant dense<0.000000e+00> : vector<8x128xf32>
    %247 = tpu.matmul %246, %4, %cst_58 {dimension_numbers = #tpu.dot_dimension_numbers<[1], [0], [0], [1], [0, 0, 1, 1], [], []>} : vector<8x32xf32>, vector<32x128xf32>, vector<8x128xf32> -> vector<8x128xf32>
    %248 = vector.broadcast %5 : vector<1x128xf32> to vector<8x128xf32>
    %249 = arith.addf %247, %248 : vector<8x128xf32>
    %250 = arith.index_cast %c2_i32 : i32 to index
    %c0_59 = arith.constant 0 : index
    %c0_60 = arith.constant 0 : index
    %251 = vector.load %arg9[%250, %c0_59, %c0_60] : memref<8x8x128xf32, #tpu.memory_space<vmem>>, vector<1x8x128xf32>
    %252 = vector.shape_cast %251 : vector<1x8x128xf32> to vector<8x128xf32>
    %253 = vector.shape_cast %249 : vector<8x128xf32> to vector<1x8x128xf32>
    tpu.vector_store %arg9[%250, %c0_59, %c0_60], %253 {strides = array<i32>} : memref<8x8x128xf32, #tpu.memory_space<vmem>>, vector<1x8x128xf32>,
    %c3_i32 = arith.constant 3 : i32
    %254 = vector.broadcast %c3_i32 : i32 to vector<8x1xi32>
    %255 = arith.cmpi sgt, %6, %254 : vector<8x1xi32>
    %cst_61 = arith.constant 1.000000e+00 : f32
    %cst_62 = arith.constant 0.000000e+00 : f32
    %256 = vector.broadcast %cst_61 : f32 to vector<8x1xf32>
    %257 = vector.broadcast %cst_62 : f32 to vector<8x1xf32>
    %258 = arith.select %255, %256, %257 : vector<8x1xi1>, vector<8x1xf32>
    %259 = arith.index_cast %c3_i32 : i32 to index
    %c0_63 = arith.constant 0 : index
    %c0_64 = arith.constant 0 : index
    %260 = vector.load %arg1[%259, %c0_63, %c0_64] : memref<8x8x128xf32, #tpu.memory_space<vmem>>, vector<1x8x128xf32>
    %261 = vector.shape_cast %260 : vector<1x8x128xf32> to vector<8x128xf32>
    %cst_65 = arith.constant dense<0.000000e+00> : vector<8x128xf32>
    %262 = tpu.matmul %203, %0, %cst_65 {dimension_numbers = #tpu.dot_dimension_numbers<[1], [0], [0], [1], [0, 0, 1, 1], [], []>} : vector<8x32xf32>, vector<32x128xf32>, vector<8x128xf32> -> vector<8x128xf32>
    %263 = arith.addf %261, %262 : vector<8x128xf32>
    %264 = arith.negf %263 : vector<8x128xf32>
    %265 = math.exp %264 : vector<8x128xf32>
    %cst_66 = arith.constant 1.000000e+00 : f32
    %266 = vector.broadcast %cst_66 : f32 to vector<8x128xf32>
    %267 = arith.addf %266, %265 : vector<8x128xf32>
    %268 = arith.divf %266, %267 : vector<8x128xf32>
    %269 = vector.extract_strided_slice %268 {offsets = [0, 0], sizes = [8, 32], strides = [1, 1]} : vector<8x128xf32> to vector<8x32xf32>
    %270 = vector.extract_strided_slice %268 {offsets = [0, 32], sizes = [8, 32], strides = [1, 1]} : vector<8x128xf32> to vector<8x32xf32>
    %271 = vector.extract_strided_slice %268 {offsets = [0, 96], sizes = [8, 32], strides = [1, 1]} : vector<8x128xf32> to vector<8x32xf32>
    %272 = vector.extract_strided_slice %263 {offsets = [0, 64], sizes = [8, 32], strides = [1, 1]} : vector<8x128xf32> to vector<8x32xf32>
    %273 = math.tanh %272 : vector<8x32xf32>
    %274 = arith.mulf %270, %210 : vector<8x32xf32>
    %275 = arith.mulf %269, %273 : vector<8x32xf32>
    %276 = arith.addf %274, %275 : vector<8x32xf32>
    %277 = math.tanh %276 : vector<8x32xf32>
    %278 = arith.mulf %271, %277 : vector<8x32xf32>
    %279 = vector.broadcast %258 : vector<8x1xf32> to vector<8x32xf32>
    %280 = arith.mulf %279, %278 : vector<8x32xf32>
    %cst_67 = arith.constant 1.000000e+00 : f32
    %281 = vector.broadcast %cst_67 : f32 to vector<8x1xf32>
    %282 = arith.subf %281, %258 : vector<8x1xf32>
    %283 = vector.broadcast %282 : vector<8x1xf32> to vector<8x32xf32>
    %284 = arith.mulf %283, %203 : vector<8x32xf32>
    %285 = arith.addf %280, %284 : vector<8x32xf32>
    %286 = vector.broadcast %258 : vector<8x1xf32> to vector<8x32xf32>
    %287 = arith.mulf %286, %276 : vector<8x32xf32>
    %cst_68 = arith.constant 1.000000e+00 : f32
    %288 = vector.broadcast %cst_68 : f32 to vector<8x1xf32>
    %289 = arith.subf %288, %258 : vector<8x1xf32>
    %290 = vector.broadcast %289 : vector<8x1xf32> to vector<8x32xf32>
    %291 = arith.mulf %290, %210 : vector<8x32xf32>
    %292 = arith.addf %287, %291 : vector<8x32xf32>
    %cst_69 = arith.constant dense<0.000000e+00> : vector<8x128xf32>
    %293 = tpu.matmul %285, %1, %cst_69 {dimension_numbers = #tpu.dot_dimension_numbers<[1], [0], [0], [1], [0, 0, 1, 1], [], []>} : vector<8x32xf32>, vector<32x128xf32>, vector<8x128xf32> -> vector<8x128xf32>
    %cst_70 = arith.constant dense<0.000000e+00> : vector<8x128xf32>
    %294 = tpu.matmul %237, %2, %cst_70 {dimension_numbers = #tpu.dot_dimension_numbers<[1], [0], [0], [1], [0, 0, 1, 1], [], []>} : vector<8x32xf32>, vector<32x128xf32>, vector<8x128xf32> -> vector<8x128xf32>
    %295 = arith.addf %293, %294 : vector<8x128xf32>
    %296 = vector.broadcast %3 : vector<1x128xf32> to vector<8x128xf32>
    %297 = arith.addf %295, %296 : vector<8x128xf32>
    %298 = arith.negf %297 : vector<8x128xf32>
    %299 = math.exp %298 : vector<8x128xf32>
    %cst_71 = arith.constant 1.000000e+00 : f32
    %300 = vector.broadcast %cst_71 : f32 to vector<8x128xf32>
    %301 = arith.addf %300, %299 : vector<8x128xf32>
    %302 = arith.divf %300, %301 : vector<8x128xf32>
    %303 = vector.extract_strided_slice %302 {offsets = [0, 0], sizes = [8, 32], strides = [1, 1]} : vector<8x128xf32> to vector<8x32xf32>
    %304 = vector.extract_strided_slice %302 {offsets = [0, 32], sizes = [8, 32], strides = [1, 1]} : vector<8x128xf32> to vector<8x32xf32>
    %305 = vector.extract_strided_slice %302 {offsets = [0, 96], sizes = [8, 32], strides = [1, 1]} : vector<8x128xf32> to vector<8x32xf32>
    %306 = vector.extract_strided_slice %297 {offsets = [0, 64], sizes = [8, 32], strides = [1, 1]} : vector<8x128xf32> to vector<8x32xf32>
    %307 = math.tanh %306 : vector<8x32xf32>
    %308 = arith.mulf %304, %244 : vector<8x32xf32>
    %309 = arith.mulf %303, %307 : vector<8x32xf32>
    %310 = arith.addf %308, %309 : vector<8x32xf32>
    %311 = math.tanh %310 : vector<8x32xf32>
    %312 = arith.mulf %305, %311 : vector<8x32xf32>
    %313 = vector.broadcast %258 : vector<8x1xf32> to vector<8x32xf32>
    %314 = arith.mulf %313, %312 : vector<8x32xf32>
    %cst_72 = arith.constant 1.000000e+00 : f32
    %315 = vector.broadcast %cst_72 : f32 to vector<8x1xf32>
    %316 = arith.subf %315, %258 : vector<8x1xf32>
    %317 = vector.broadcast %316 : vector<8x1xf32> to vector<8x32xf32>
    %318 = arith.mulf %317, %237 : vector<8x32xf32>
    %319 = arith.addf %314, %318 : vector<8x32xf32>
    %320 = vector.broadcast %258 : vector<8x1xf32> to vector<8x32xf32>
    %321 = arith.mulf %320, %310 : vector<8x32xf32>
    %cst_73 = arith.constant 1.000000e+00 : f32
    %322 = vector.broadcast %cst_73 : f32 to vector<8x1xf32>
    %323 = arith.subf %322, %258 : vector<8x1xf32>
    %324 = vector.broadcast %323 : vector<8x1xf32> to vector<8x32xf32>
    %325 = arith.mulf %324, %244 : vector<8x32xf32>
    %326 = arith.addf %321, %325 : vector<8x32xf32>
    %327 = vector.broadcast %258 : vector<8x1xf32> to vector<8x32xf32>
    %328 = arith.mulf %327, %312 : vector<8x32xf32>
    %cst_74 = arith.constant dense<0.000000e+00> : vector<8x128xf32>
    %329 = tpu.matmul %328, %4, %cst_74 {dimension_numbers = #tpu.dot_dimension_numbers<[1], [0], [0], [1], [0, 0, 1, 1], [], []>} : vector<8x32xf32>, vector<32x128xf32>, vector<8x128xf32> -> vector<8x128xf32>
    %330 = vector.broadcast %5 : vector<1x128xf32> to vector<8x128xf32>
    %331 = arith.addf %329, %330 : vector<8x128xf32>
    %332 = arith.index_cast %c3_i32 : i32 to index
    %c0_75 = arith.constant 0 : index
    %c0_76 = arith.constant 0 : index
    %333 = vector.load %arg9[%332, %c0_75, %c0_76] : memref<8x8x128xf32, #tpu.memory_space<vmem>>, vector<1x8x128xf32>
    %334 = vector.shape_cast %333 : vector<1x8x128xf32> to vector<8x128xf32>
    %335 = vector.shape_cast %331 : vector<8x128xf32> to vector<1x8x128xf32>
    tpu.vector_store %arg9[%332, %c0_75, %c0_76], %335 {strides = array<i32>} : memref<8x8x128xf32, #tpu.memory_space<vmem>>, vector<1x8x128xf32>,
    %c4_i32 = arith.constant 4 : i32
    %336 = vector.broadcast %c4_i32 : i32 to vector<8x1xi32>
    %337 = arith.cmpi sgt, %6, %336 : vector<8x1xi32>
    %cst_77 = arith.constant 1.000000e+00 : f32
    %cst_78 = arith.constant 0.000000e+00 : f32
    %338 = vector.broadcast %cst_77 : f32 to vector<8x1xf32>
    %339 = vector.broadcast %cst_78 : f32 to vector<8x1xf32>
    %340 = arith.select %337, %338, %339 : vector<8x1xi1>, vector<8x1xf32>
    %341 = arith.index_cast %c4_i32 : i32 to index
    %c0_79 = arith.constant 0 : index
    %c0_80 = arith.constant 0 : index
    %342 = vector.load %arg1[%341, %c0_79, %c0_80] : memref<8x8x128xf32, #tpu.memory_space<vmem>>, vector<1x8x128xf32>
    %343 = vector.shape_cast %342 : vector<1x8x128xf32> to vector<8x128xf32>
    %cst_81 = arith.constant dense<0.000000e+00> : vector<8x128xf32>
    %344 = tpu.matmul %285, %0, %cst_81 {dimension_numbers = #tpu.dot_dimension_numbers<[1], [0], [0], [1], [0, 0, 1, 1], [], []>} : vector<8x32xf32>, vector<32x128xf32>, vector<8x128xf32> -> vector<8x128xf32>
    %345 = arith.addf %343, %344 : vector<8x128xf32>
    %346 = arith.negf %345 : vector<8x128xf32>
    %347 = math.exp %346 : vector<8x128xf32>
    %cst_82 = arith.constant 1.000000e+00 : f32
    %348 = vector.broadcast %cst_82 : f32 to vector<8x128xf32>
    %349 = arith.addf %348, %347 : vector<8x128xf32>
    %350 = arith.divf %348, %349 : vector<8x128xf32>
    %351 = vector.extract_strided_slice %350 {offsets = [0, 0], sizes = [8, 32], strides = [1, 1]} : vector<8x128xf32> to vector<8x32xf32>
    %352 = vector.extract_strided_slice %350 {offsets = [0, 32], sizes = [8, 32], strides = [1, 1]} : vector<8x128xf32> to vector<8x32xf32>
    %353 = vector.extract_strided_slice %350 {offsets = [0, 96], sizes = [8, 32], strides = [1, 1]} : vector<8x128xf32> to vector<8x32xf32>
    %354 = vector.extract_strided_slice %345 {offsets = [0, 64], sizes = [8, 32], strides = [1, 1]} : vector<8x128xf32> to vector<8x32xf32>
    %355 = math.tanh %354 : vector<8x32xf32>
    %356 = arith.mulf %352, %292 : vector<8x32xf32>
    %357 = arith.mulf %351, %355 : vector<8x32xf32>
    %358 = arith.addf %356, %357 : vector<8x32xf32>
    %359 = math.tanh %358 : vector<8x32xf32>
    %360 = arith.mulf %353, %359 : vector<8x32xf32>
    %361 = vector.broadcast %340 : vector<8x1xf32> to vector<8x32xf32>
    %362 = arith.mulf %361, %360 : vector<8x32xf32>
    %cst_83 = arith.constant 1.000000e+00 : f32
    %363 = vector.broadcast %cst_83 : f32 to vector<8x1xf32>
    %364 = arith.subf %363, %340 : vector<8x1xf32>
    %365 = vector.broadcast %364 : vector<8x1xf32> to vector<8x32xf32>
    %366 = arith.mulf %365, %285 : vector<8x32xf32>
    %367 = arith.addf %362, %366 : vector<8x32xf32>
    %368 = vector.broadcast %340 : vector<8x1xf32> to vector<8x32xf32>
    %369 = arith.mulf %368, %358 : vector<8x32xf32>
    %cst_84 = arith.constant 1.000000e+00 : f32
    %370 = vector.broadcast %cst_84 : f32 to vector<8x1xf32>
    %371 = arith.subf %370, %340 : vector<8x1xf32>
    %372 = vector.broadcast %371 : vector<8x1xf32> to vector<8x32xf32>
    %373 = arith.mulf %372, %292 : vector<8x32xf32>
    %374 = arith.addf %369, %373 : vector<8x32xf32>
    %cst_85 = arith.constant dense<0.000000e+00> : vector<8x128xf32>
    %375 = tpu.matmul %367, %1, %cst_85 {dimension_numbers = #tpu.dot_dimension_numbers<[1], [0], [0], [1], [0, 0, 1, 1], [], []>} : vector<8x32xf32>, vector<32x128xf32>, vector<8x128xf32> -> vector<8x128xf32>
    %cst_86 = arith.constant dense<0.000000e+00> : vector<8x128xf32>
    %376 = tpu.matmul %319, %2, %cst_86 {dimension_numbers = #tpu.dot_dimension_numbers<[1], [0], [0], [1], [0, 0, 1, 1], [], []>} : vector<8x32xf32>, vector<32x128xf32>, vector<8x128xf32> -> vector<8x128xf32>
    %377 = arith.addf %375, %376 : vector<8x128xf32>
    %378 = vector.broadcast %3 : vector<1x128xf32> to vector<8x128xf32>
    %379 = arith.addf %377, %378 : vector<8x128xf32>
    %380 = arith.negf %379 : vector<8x128xf32>
    %381 = math.exp %380 : vector<8x128xf32>
    %cst_87 = arith.constant 1.000000e+00 : f32
    %382 = vector.broadcast %cst_87 : f32 to vector<8x128xf32>
    %383 = arith.addf %382, %381 : vector<8x128xf32>
    %384 = arith.divf %382, %383 : vector<8x128xf32>
    %385 = vector.extract_strided_slice %384 {offsets = [0, 0], sizes = [8, 32], strides = [1, 1]} : vector<8x128xf32> to vector<8x32xf32>
    %386 = vector.extract_strided_slice %384 {offsets = [0, 32], sizes = [8, 32], strides = [1, 1]} : vector<8x128xf32> to vector<8x32xf32>
    %387 = vector.extract_strided_slice %384 {offsets = [0, 96], sizes = [8, 32], strides = [1, 1]} : vector<8x128xf32> to vector<8x32xf32>
    %388 = vector.extract_strided_slice %379 {offsets = [0, 64], sizes = [8, 32], strides = [1, 1]} : vector<8x128xf32> to vector<8x32xf32>
    %389 = math.tanh %388 : vector<8x32xf32>
    %390 = arith.mulf %386, %326 : vector<8x32xf32>
    %391 = arith.mulf %385, %389 : vector<8x32xf32>
    %392 = arith.addf %390, %391 : vector<8x32xf32>
    %393 = math.tanh %392 : vector<8x32xf32>
    %394 = arith.mulf %387, %393 : vector<8x32xf32>
    %395 = vector.broadcast %340 : vector<8x1xf32> to vector<8x32xf32>
    %396 = arith.mulf %395, %394 : vector<8x32xf32>
    %cst_88 = arith.constant 1.000000e+00 : f32
    %397 = vector.broadcast %cst_88 : f32 to vector<8x1xf32>
    %398 = arith.subf %397, %340 : vector<8x1xf32>
    %399 = vector.broadcast %398 : vector<8x1xf32> to vector<8x32xf32>
    %400 = arith.mulf %399, %319 : vector<8x32xf32>
    %401 = arith.addf %396, %400 : vector<8x32xf32>
    %402 = vector.broadcast %340 : vector<8x1xf32> to vector<8x32xf32>
    %403 = arith.mulf %402, %392 : vector<8x32xf32>
    %cst_89 = arith.constant 1.000000e+00 : f32
    %404 = vector.broadcast %cst_89 : f32 to vector<8x1xf32>
    %405 = arith.subf %404, %340 : vector<8x1xf32>
    %406 = vector.broadcast %405 : vector<8x1xf32> to vector<8x32xf32>
    %407 = arith.mulf %406, %326 : vector<8x32xf32>
    %408 = arith.addf %403, %407 : vector<8x32xf32>
    %409 = vector.broadcast %340 : vector<8x1xf32> to vector<8x32xf32>
    %410 = arith.mulf %409, %394 : vector<8x32xf32>
    %cst_90 = arith.constant dense<0.000000e+00> : vector<8x128xf32>
    %411 = tpu.matmul %410, %4, %cst_90 {dimension_numbers = #tpu.dot_dimension_numbers<[1], [0], [0], [1], [0, 0, 1, 1], [], []>} : vector<8x32xf32>, vector<32x128xf32>, vector<8x128xf32> -> vector<8x128xf32>
    %412 = vector.broadcast %5 : vector<1x128xf32> to vector<8x128xf32>
    %413 = arith.addf %411, %412 : vector<8x128xf32>
    %414 = arith.index_cast %c4_i32 : i32 to index
    %c0_91 = arith.constant 0 : index
    %c0_92 = arith.constant 0 : index
    %415 = vector.load %arg9[%414, %c0_91, %c0_92] : memref<8x8x128xf32, #tpu.memory_space<vmem>>, vector<1x8x128xf32>
    %416 = vector.shape_cast %415 : vector<1x8x128xf32> to vector<8x128xf32>
    %417 = vector.shape_cast %413 : vector<8x128xf32> to vector<1x8x128xf32>
    tpu.vector_store %arg9[%414, %c0_91, %c0_92], %417 {strides = array<i32>} : memref<8x8x128xf32, #tpu.memory_space<vmem>>, vector<1x8x128xf32>,
    %c5_i32 = arith.constant 5 : i32
    %418 = vector.broadcast %c5_i32 : i32 to vector<8x1xi32>
    %419 = arith.cmpi sgt, %6, %418 : vector<8x1xi32>
    %cst_93 = arith.constant 1.000000e+00 : f32
    %cst_94 = arith.constant 0.000000e+00 : f32
    %420 = vector.broadcast %cst_93 : f32 to vector<8x1xf32>
    %421 = vector.broadcast %cst_94 : f32 to vector<8x1xf32>
    %422 = arith.select %419, %420, %421 : vector<8x1xi1>, vector<8x1xf32>
    %423 = arith.index_cast %c5_i32 : i32 to index
    %c0_95 = arith.constant 0 : index
    %c0_96 = arith.constant 0 : index
    %424 = vector.load %arg1[%423, %c0_95, %c0_96] : memref<8x8x128xf32, #tpu.memory_space<vmem>>, vector<1x8x128xf32>
    %425 = vector.shape_cast %424 : vector<1x8x128xf32> to vector<8x128xf32>
    %cst_97 = arith.constant dense<0.000000e+00> : vector<8x128xf32>
    %426 = tpu.matmul %367, %0, %cst_97 {dimension_numbers = #tpu.dot_dimension_numbers<[1], [0], [0], [1], [0, 0, 1, 1], [], []>} : vector<8x32xf32>, vector<32x128xf32>, vector<8x128xf32> -> vector<8x128xf32>
    %427 = arith.addf %425, %426 : vector<8x128xf32>
    %428 = arith.negf %427 : vector<8x128xf32>
    %429 = math.exp %428 : vector<8x128xf32>
    %cst_98 = arith.constant 1.000000e+00 : f32
    %430 = vector.broadcast %cst_98 : f32 to vector<8x128xf32>
    %431 = arith.addf %430, %429 : vector<8x128xf32>
    %432 = arith.divf %430, %431 : vector<8x128xf32>
    %433 = vector.extract_strided_slice %432 {offsets = [0, 0], sizes = [8, 32], strides = [1, 1]} : vector<8x128xf32> to vector<8x32xf32>
    %434 = vector.extract_strided_slice %432 {offsets = [0, 32], sizes = [8, 32], strides = [1, 1]} : vector<8x128xf32> to vector<8x32xf32>
    %435 = vector.extract_strided_slice %432 {offsets = [0, 96], sizes = [8, 32], strides = [1, 1]} : vector<8x128xf32> to vector<8x32xf32>
    %436 = vector.extract_strided_slice %427 {offsets = [0, 64], sizes = [8, 32], strides = [1, 1]} : vector<8x128xf32> to vector<8x32xf32>
    %437 = math.tanh %436 : vector<8x32xf32>
    %438 = arith.mulf %434, %374 : vector<8x32xf32>
    %439 = arith.mulf %433, %437 : vector<8x32xf32>
    %440 = arith.addf %438, %439 : vector<8x32xf32>
    %441 = math.tanh %440 : vector<8x32xf32>
    %442 = arith.mulf %435, %441 : vector<8x32xf32>
    %443 = vector.broadcast %422 : vector<8x1xf32> to vector<8x32xf32>
    %444 = arith.mulf %443, %442 : vector<8x32xf32>
    %cst_99 = arith.constant 1.000000e+00 : f32
    %445 = vector.broadcast %cst_99 : f32 to vector<8x1xf32>
    %446 = arith.subf %445, %422 : vector<8x1xf32>
    %447 = vector.broadcast %446 : vector<8x1xf32> to vector<8x32xf32>
    %448 = arith.mulf %447, %367 : vector<8x32xf32>
    %449 = arith.addf %444, %448 : vector<8x32xf32>
    %450 = vector.broadcast %422 : vector<8x1xf32> to vector<8x32xf32>
    %451 = arith.mulf %450, %440 : vector<8x32xf32>
    %cst_100 = arith.constant 1.000000e+00 : f32
    %452 = vector.broadcast %cst_100 : f32 to vector<8x1xf32>
    %453 = arith.subf %452, %422 : vector<8x1xf32>
    %454 = vector.broadcast %453 : vector<8x1xf32> to vector<8x32xf32>
    %455 = arith.mulf %454, %374 : vector<8x32xf32>
    %456 = arith.addf %451, %455 : vector<8x32xf32>
    %cst_101 = arith.constant dense<0.000000e+00> : vector<8x128xf32>
    %457 = tpu.matmul %449, %1, %cst_101 {dimension_numbers = #tpu.dot_dimension_numbers<[1], [0], [0], [1], [0, 0, 1, 1], [], []>} : vector<8x32xf32>, vector<32x128xf32>, vector<8x128xf32> -> vector<8x128xf32>
    %cst_102 = arith.constant dense<0.000000e+00> : vector<8x128xf32>
    %458 = tpu.matmul %401, %2, %cst_102 {dimension_numbers = #tpu.dot_dimension_numbers<[1], [0], [0], [1], [0, 0, 1, 1], [], []>} : vector<8x32xf32>, vector<32x128xf32>, vector<8x128xf32> -> vector<8x128xf32>
    %459 = arith.addf %457, %458 : vector<8x128xf32>
    %460 = vector.broadcast %3 : vector<1x128xf32> to vector<8x128xf32>
    %461 = arith.addf %459, %460 : vector<8x128xf32>
    %462 = arith.negf %461 : vector<8x128xf32>
    %463 = math.exp %462 : vector<8x128xf32>
    %cst_103 = arith.constant 1.000000e+00 : f32
    %464 = vector.broadcast %cst_103 : f32 to vector<8x128xf32>
    %465 = arith.addf %464, %463 : vector<8x128xf32>
    %466 = arith.divf %464, %465 : vector<8x128xf32>
    %467 = vector.extract_strided_slice %466 {offsets = [0, 0], sizes = [8, 32], strides = [1, 1]} : vector<8x128xf32> to vector<8x32xf32>
    %468 = vector.extract_strided_slice %466 {offsets = [0, 32], sizes = [8, 32], strides = [1, 1]} : vector<8x128xf32> to vector<8x32xf32>
    %469 = vector.extract_strided_slice %466 {offsets = [0, 96], sizes = [8, 32], strides = [1, 1]} : vector<8x128xf32> to vector<8x32xf32>
    %470 = vector.extract_strided_slice %461 {offsets = [0, 64], sizes = [8, 32], strides = [1, 1]} : vector<8x128xf32> to vector<8x32xf32>
    %471 = math.tanh %470 : vector<8x32xf32>
    %472 = arith.mulf %468, %408 : vector<8x32xf32>
    %473 = arith.mulf %467, %471 : vector<8x32xf32>
    %474 = arith.addf %472, %473 : vector<8x32xf32>
    %475 = math.tanh %474 : vector<8x32xf32>
    %476 = arith.mulf %469, %475 : vector<8x32xf32>
    %477 = vector.broadcast %422 : vector<8x1xf32> to vector<8x32xf32>
    %478 = arith.mulf %477, %476 : vector<8x32xf32>
    %cst_104 = arith.constant 1.000000e+00 : f32
    %479 = vector.broadcast %cst_104 : f32 to vector<8x1xf32>
    %480 = arith.subf %479, %422 : vector<8x1xf32>
    %481 = vector.broadcast %480 : vector<8x1xf32> to vector<8x32xf32>
    %482 = arith.mulf %481, %401 : vector<8x32xf32>
    %483 = arith.addf %478, %482 : vector<8x32xf32>
    %484 = vector.broadcast %422 : vector<8x1xf32> to vector<8x32xf32>
    %485 = arith.mulf %484, %474 : vector<8x32xf32>
    %cst_105 = arith.constant 1.000000e+00 : f32
    %486 = vector.broadcast %cst_105 : f32 to vector<8x1xf32>
    %487 = arith.subf %486, %422 : vector<8x1xf32>
    %488 = vector.broadcast %487 : vector<8x1xf32> to vector<8x32xf32>
    %489 = arith.mulf %488, %408 : vector<8x32xf32>
    %490 = arith.addf %485, %489 : vector<8x32xf32>
    %491 = vector.broadcast %422 : vector<8x1xf32> to vector<8x32xf32>
    %492 = arith.mulf %491, %476 : vector<8x32xf32>
    %cst_106 = arith.constant dense<0.000000e+00> : vector<8x128xf32>
    %493 = tpu.matmul %492, %4, %cst_106 {dimension_numbers = #tpu.dot_dimension_numbers<[1], [0], [0], [1], [0, 0, 1, 1], [], []>} : vector<8x32xf32>, vector<32x128xf32>, vector<8x128xf32> -> vector<8x128xf32>
    %494 = vector.broadcast %5 : vector<1x128xf32> to vector<8x128xf32>
    %495 = arith.addf %493, %494 : vector<8x128xf32>
    %496 = arith.index_cast %c5_i32 : i32 to index
    %c0_107 = arith.constant 0 : index
    %c0_108 = arith.constant 0 : index
    %497 = vector.load %arg9[%496, %c0_107, %c0_108] : memref<8x8x128xf32, #tpu.memory_space<vmem>>, vector<1x8x128xf32>
    %498 = vector.shape_cast %497 : vector<1x8x128xf32> to vector<8x128xf32>
    %499 = vector.shape_cast %495 : vector<8x128xf32> to vector<1x8x128xf32>
    tpu.vector_store %arg9[%496, %c0_107, %c0_108], %499 {strides = array<i32>} : memref<8x8x128xf32, #tpu.memory_space<vmem>>, vector<1x8x128xf32>,
    %c6_i32 = arith.constant 6 : i32
    %500 = vector.broadcast %c6_i32 : i32 to vector<8x1xi32>
    %501 = arith.cmpi sgt, %6, %500 : vector<8x1xi32>
    %cst_109 = arith.constant 1.000000e+00 : f32
    %cst_110 = arith.constant 0.000000e+00 : f32
    %502 = vector.broadcast %cst_109 : f32 to vector<8x1xf32>
    %503 = vector.broadcast %cst_110 : f32 to vector<8x1xf32>
    %504 = arith.select %501, %502, %503 : vector<8x1xi1>, vector<8x1xf32>
    %505 = arith.index_cast %c6_i32 : i32 to index
    %c0_111 = arith.constant 0 : index
    %c0_112 = arith.constant 0 : index
    %506 = vector.load %arg1[%505, %c0_111, %c0_112] : memref<8x8x128xf32, #tpu.memory_space<vmem>>, vector<1x8x128xf32>
    %507 = vector.shape_cast %506 : vector<1x8x128xf32> to vector<8x128xf32>
    %cst_113 = arith.constant dense<0.000000e+00> : vector<8x128xf32>
    %508 = tpu.matmul %449, %0, %cst_113 {dimension_numbers = #tpu.dot_dimension_numbers<[1], [0], [0], [1], [0, 0, 1, 1], [], []>} : vector<8x32xf32>, vector<32x128xf32>, vector<8x128xf32> -> vector<8x128xf32>
    %509 = arith.addf %507, %508 : vector<8x128xf32>
    %510 = arith.negf %509 : vector<8x128xf32>
    %511 = math.exp %510 : vector<8x128xf32>
    %cst_114 = arith.constant 1.000000e+00 : f32
    %512 = vector.broadcast %cst_114 : f32 to vector<8x128xf32>
    %513 = arith.addf %512, %511 : vector<8x128xf32>
    %514 = arith.divf %512, %513 : vector<8x128xf32>
    %515 = vector.extract_strided_slice %514 {offsets = [0, 0], sizes = [8, 32], strides = [1, 1]} : vector<8x128xf32> to vector<8x32xf32>
    %516 = vector.extract_strided_slice %514 {offsets = [0, 32], sizes = [8, 32], strides = [1, 1]} : vector<8x128xf32> to vector<8x32xf32>
    %517 = vector.extract_strided_slice %514 {offsets = [0, 96], sizes = [8, 32], strides = [1, 1]} : vector<8x128xf32> to vector<8x32xf32>
    %518 = vector.extract_strided_slice %509 {offsets = [0, 64], sizes = [8, 32], strides = [1, 1]} : vector<8x128xf32> to vector<8x32xf32>
    %519 = math.tanh %518 : vector<8x32xf32>
    %520 = arith.mulf %516, %456 : vector<8x32xf32>
    %521 = arith.mulf %515, %519 : vector<8x32xf32>
    %522 = arith.addf %520, %521 : vector<8x32xf32>
    %523 = math.tanh %522 : vector<8x32xf32>
    %524 = arith.mulf %517, %523 : vector<8x32xf32>
    %525 = vector.broadcast %504 : vector<8x1xf32> to vector<8x32xf32>
    %526 = arith.mulf %525, %524 : vector<8x32xf32>
    %cst_115 = arith.constant 1.000000e+00 : f32
    %527 = vector.broadcast %cst_115 : f32 to vector<8x1xf32>
    %528 = arith.subf %527, %504 : vector<8x1xf32>
    %529 = vector.broadcast %528 : vector<8x1xf32> to vector<8x32xf32>
    %530 = arith.mulf %529, %449 : vector<8x32xf32>
    %531 = arith.addf %526, %530 : vector<8x32xf32>
    %532 = vector.broadcast %504 : vector<8x1xf32> to vector<8x32xf32>
    %533 = arith.mulf %532, %522 : vector<8x32xf32>
    %cst_116 = arith.constant 1.000000e+00 : f32
    %534 = vector.broadcast %cst_116 : f32 to vector<8x1xf32>
    %535 = arith.subf %534, %504 : vector<8x1xf32>
    %536 = vector.broadcast %535 : vector<8x1xf32> to vector<8x32xf32>
    %537 = arith.mulf %536, %456 : vector<8x32xf32>
    %538 = arith.addf %533, %537 : vector<8x32xf32>
    %cst_117 = arith.constant dense<0.000000e+00> : vector<8x128xf32>
    %539 = tpu.matmul %531, %1, %cst_117 {dimension_numbers = #tpu.dot_dimension_numbers<[1], [0], [0], [1], [0, 0, 1, 1], [], []>} : vector<8x32xf32>, vector<32x128xf32>, vector<8x128xf32> -> vector<8x128xf32>
    %cst_118 = arith.constant dense<0.000000e+00> : vector<8x128xf32>
    %540 = tpu.matmul %483, %2, %cst_118 {dimension_numbers = #tpu.dot_dimension_numbers<[1], [0], [0], [1], [0, 0, 1, 1], [], []>} : vector<8x32xf32>, vector<32x128xf32>, vector<8x128xf32> -> vector<8x128xf32>
    %541 = arith.addf %539, %540 : vector<8x128xf32>
    %542 = vector.broadcast %3 : vector<1x128xf32> to vector<8x128xf32>
    %543 = arith.addf %541, %542 : vector<8x128xf32>
    %544 = arith.negf %543 : vector<8x128xf32>
    %545 = math.exp %544 : vector<8x128xf32>
    %cst_119 = arith.constant 1.000000e+00 : f32
    %546 = vector.broadcast %cst_119 : f32 to vector<8x128xf32>
    %547 = arith.addf %546, %545 : vector<8x128xf32>
    %548 = arith.divf %546, %547 : vector<8x128xf32>
    %549 = vector.extract_strided_slice %548 {offsets = [0, 0], sizes = [8, 32], strides = [1, 1]} : vector<8x128xf32> to vector<8x32xf32>
    %550 = vector.extract_strided_slice %548 {offsets = [0, 32], sizes = [8, 32], strides = [1, 1]} : vector<8x128xf32> to vector<8x32xf32>
    %551 = vector.extract_strided_slice %548 {offsets = [0, 96], sizes = [8, 32], strides = [1, 1]} : vector<8x128xf32> to vector<8x32xf32>
    %552 = vector.extract_strided_slice %543 {offsets = [0, 64], sizes = [8, 32], strides = [1, 1]} : vector<8x128xf32> to vector<8x32xf32>
    %553 = math.tanh %552 : vector<8x32xf32>
    %554 = arith.mulf %550, %490 : vector<8x32xf32>
    %555 = arith.mulf %549, %553 : vector<8x32xf32>
    %556 = arith.addf %554, %555 : vector<8x32xf32>
    %557 = math.tanh %556 : vector<8x32xf32>
    %558 = arith.mulf %551, %557 : vector<8x32xf32>
    %559 = vector.broadcast %504 : vector<8x1xf32> to vector<8x32xf32>
    %560 = arith.mulf %559, %558 : vector<8x32xf32>
    %cst_120 = arith.constant 1.000000e+00 : f32
    %561 = vector.broadcast %cst_120 : f32 to vector<8x1xf32>
    %562 = arith.subf %561, %504 : vector<8x1xf32>
    %563 = vector.broadcast %562 : vector<8x1xf32> to vector<8x32xf32>
    %564 = arith.mulf %563, %483 : vector<8x32xf32>
    %565 = arith.addf %560, %564 : vector<8x32xf32>
    %566 = vector.broadcast %504 : vector<8x1xf32> to vector<8x32xf32>
    %567 = arith.mulf %566, %556 : vector<8x32xf32>
    %cst_121 = arith.constant 1.000000e+00 : f32
    %568 = vector.broadcast %cst_121 : f32 to vector<8x1xf32>
    %569 = arith.subf %568, %504 : vector<8x1xf32>
    %570 = vector.broadcast %569 : vector<8x1xf32> to vector<8x32xf32>
    %571 = arith.mulf %570, %490 : vector<8x32xf32>
    %572 = arith.addf %567, %571 : vector<8x32xf32>
    %573 = vector.broadcast %504 : vector<8x1xf32> to vector<8x32xf32>
    %574 = arith.mulf %573, %558 : vector<8x32xf32>
    %cst_122 = arith.constant dense<0.000000e+00> : vector<8x128xf32>
    %575 = tpu.matmul %574, %4, %cst_122 {dimension_numbers = #tpu.dot_dimension_numbers<[1], [0], [0], [1], [0, 0, 1, 1], [], []>} : vector<8x32xf32>, vector<32x128xf32>, vector<8x128xf32> -> vector<8x128xf32>
    %576 = vector.broadcast %5 : vector<1x128xf32> to vector<8x128xf32>
    %577 = arith.addf %575, %576 : vector<8x128xf32>
    %578 = arith.index_cast %c6_i32 : i32 to index
    %c0_123 = arith.constant 0 : index
    %c0_124 = arith.constant 0 : index
    %579 = vector.load %arg9[%578, %c0_123, %c0_124] : memref<8x8x128xf32, #tpu.memory_space<vmem>>, vector<1x8x128xf32>
    %580 = vector.shape_cast %579 : vector<1x8x128xf32> to vector<8x128xf32>
    %581 = vector.shape_cast %577 : vector<8x128xf32> to vector<1x8x128xf32>
    tpu.vector_store %arg9[%578, %c0_123, %c0_124], %581 {strides = array<i32>} : memref<8x8x128xf32, #tpu.memory_space<vmem>>, vector<1x8x128xf32>,
    %c7_i32 = arith.constant 7 : i32
    %582 = vector.broadcast %c7_i32 : i32 to vector<8x1xi32>
    %583 = arith.cmpi sgt, %6, %582 : vector<8x1xi32>
    %cst_125 = arith.constant 1.000000e+00 : f32
    %cst_126 = arith.constant 0.000000e+00 : f32
    %584 = vector.broadcast %cst_125 : f32 to vector<8x1xf32>
    %585 = vector.broadcast %cst_126 : f32 to vector<8x1xf32>
    %586 = arith.select %583, %584, %585 : vector<8x1xi1>, vector<8x1xf32>
    %587 = arith.index_cast %c7_i32 : i32 to index
    %c0_127 = arith.constant 0 : index
    %c0_128 = arith.constant 0 : index
    %588 = vector.load %arg1[%587, %c0_127, %c0_128] : memref<8x8x128xf32, #tpu.memory_space<vmem>>, vector<1x8x128xf32>
    %589 = vector.shape_cast %588 : vector<1x8x128xf32> to vector<8x128xf32>
    %cst_129 = arith.constant dense<0.000000e+00> : vector<8x128xf32>
    %590 = tpu.matmul %531, %0, %cst_129 {dimension_numbers = #tpu.dot_dimension_numbers<[1], [0], [0], [1], [0, 0, 1, 1], [], []>} : vector<8x32xf32>, vector<32x128xf32>, vector<8x128xf32> -> vector<8x128xf32>
    %591 = arith.addf %589, %590 : vector<8x128xf32>
    %592 = arith.negf %591 : vector<8x128xf32>
    %593 = math.exp %592 : vector<8x128xf32>
    %cst_130 = arith.constant 1.000000e+00 : f32
    %594 = vector.broadcast %cst_130 : f32 to vector<8x128xf32>
    %595 = arith.addf %594, %593 : vector<8x128xf32>
    %596 = arith.divf %594, %595 : vector<8x128xf32>
    %597 = vector.extract_strided_slice %596 {offsets = [0, 0], sizes = [8, 32], strides = [1, 1]} : vector<8x128xf32> to vector<8x32xf32>
    %598 = vector.extract_strided_slice %596 {offsets = [0, 32], sizes = [8, 32], strides = [1, 1]} : vector<8x128xf32> to vector<8x32xf32>
    %599 = vector.extract_strided_slice %596 {offsets = [0, 96], sizes = [8, 32], strides = [1, 1]} : vector<8x128xf32> to vector<8x32xf32>
    %600 = vector.extract_strided_slice %591 {offsets = [0, 64], sizes = [8, 32], strides = [1, 1]} : vector<8x128xf32> to vector<8x32xf32>
    %601 = math.tanh %600 : vector<8x32xf32>
    %602 = arith.mulf %598, %538 : vector<8x32xf32>
    %603 = arith.mulf %597, %601 : vector<8x32xf32>
    %604 = arith.addf %602, %603 : vector<8x32xf32>
    %605 = math.tanh %604 : vector<8x32xf32>
    %606 = arith.mulf %599, %605 : vector<8x32xf32>
    %607 = vector.broadcast %586 : vector<8x1xf32> to vector<8x32xf32>
    %608 = arith.mulf %607, %606 : vector<8x32xf32>
    %cst_131 = arith.constant 1.000000e+00 : f32
    %609 = vector.broadcast %cst_131 : f32 to vector<8x1xf32>
    %610 = arith.subf %609, %586 : vector<8x1xf32>
    %611 = vector.broadcast %610 : vector<8x1xf32> to vector<8x32xf32>
    %612 = arith.mulf %611, %531 : vector<8x32xf32>
    %613 = arith.addf %608, %612 : vector<8x32xf32>
    %614 = vector.broadcast %586 : vector<8x1xf32> to vector<8x32xf32>
    %615 = arith.mulf %614, %604 : vector<8x32xf32>
    %cst_132 = arith.constant 1.000000e+00 : f32
    %616 = vector.broadcast %cst_132 : f32 to vector<8x1xf32>
    %617 = arith.subf %616, %586 : vector<8x1xf32>
    %618 = vector.broadcast %617 : vector<8x1xf32> to vector<8x32xf32>
    %619 = arith.mulf %618, %538 : vector<8x32xf32>
    %620 = arith.addf %615, %619 : vector<8x32xf32>
    %cst_133 = arith.constant dense<0.000000e+00> : vector<8x128xf32>
    %621 = tpu.matmul %613, %1, %cst_133 {dimension_numbers = #tpu.dot_dimension_numbers<[1], [0], [0], [1], [0, 0, 1, 1], [], []>} : vector<8x32xf32>, vector<32x128xf32>, vector<8x128xf32> -> vector<8x128xf32>
    %cst_134 = arith.constant dense<0.000000e+00> : vector<8x128xf32>
    %622 = tpu.matmul %565, %2, %cst_134 {dimension_numbers = #tpu.dot_dimension_numbers<[1], [0], [0], [1], [0, 0, 1, 1], [], []>} : vector<8x32xf32>, vector<32x128xf32>, vector<8x128xf32> -> vector<8x128xf32>
    %623 = arith.addf %621, %622 : vector<8x128xf32>
    %624 = vector.broadcast %3 : vector<1x128xf32> to vector<8x128xf32>
    %625 = arith.addf %623, %624 : vector<8x128xf32>
    %626 = arith.negf %625 : vector<8x128xf32>
    %627 = math.exp %626 : vector<8x128xf32>
    %cst_135 = arith.constant 1.000000e+00 : f32
    %628 = vector.broadcast %cst_135 : f32 to vector<8x128xf32>
    %629 = arith.addf %628, %627 : vector<8x128xf32>
    %630 = arith.divf %628, %629 : vector<8x128xf32>
    %631 = vector.extract_strided_slice %630 {offsets = [0, 0], sizes = [8, 32], strides = [1, 1]} : vector<8x128xf32> to vector<8x32xf32>
    %632 = vector.extract_strided_slice %630 {offsets = [0, 32], sizes = [8, 32], strides = [1, 1]} : vector<8x128xf32> to vector<8x32xf32>
    %633 = vector.extract_strided_slice %630 {offsets = [0, 96], sizes = [8, 32], strides = [1, 1]} : vector<8x128xf32> to vector<8x32xf32>
    %634 = vector.extract_strided_slice %625 {offsets = [0, 64], sizes = [8, 32], strides = [1, 1]} : vector<8x128xf32> to vector<8x32xf32>
    %635 = math.tanh %634 : vector<8x32xf32>
    %636 = arith.mulf %632, %572 : vector<8x32xf32>
    %637 = arith.mulf %631, %635 : vector<8x32xf32>
    %638 = arith.addf %636, %637 : vector<8x32xf32>
    %639 = math.tanh %638 : vector<8x32xf32>
    %640 = arith.mulf %633, %639 : vector<8x32xf32>
    %641 = vector.broadcast %586 : vector<8x1xf32> to vector<8x32xf32>
    %642 = arith.mulf %641, %640 : vector<8x32xf32>
    %cst_136 = arith.constant 1.000000e+00 : f32
    %643 = vector.broadcast %cst_136 : f32 to vector<8x1xf32>
    %644 = arith.subf %643, %586 : vector<8x1xf32>
    %645 = vector.broadcast %644 : vector<8x1xf32> to vector<8x32xf32>
    %646 = arith.mulf %645, %565 : vector<8x32xf32>
    %647 = arith.addf %642, %646 : vector<8x32xf32>
    %648 = vector.broadcast %586 : vector<8x1xf32> to vector<8x32xf32>
    %649 = arith.mulf %648, %638 : vector<8x32xf32>
    %cst_137 = arith.constant 1.000000e+00 : f32
    %650 = vector.broadcast %cst_137 : f32 to vector<8x1xf32>
    %651 = arith.subf %650, %586 : vector<8x1xf32>
    %652 = vector.broadcast %651 : vector<8x1xf32> to vector<8x32xf32>
    %653 = arith.mulf %652, %572 : vector<8x32xf32>
    %654 = arith.addf %649, %653 : vector<8x32xf32>
    %655 = vector.broadcast %586 : vector<8x1xf32> to vector<8x32xf32>
    %656 = arith.mulf %655, %640 : vector<8x32xf32>
    %cst_138 = arith.constant dense<0.000000e+00> : vector<8x128xf32>
    %657 = tpu.matmul %656, %4, %cst_138 {dimension_numbers = #tpu.dot_dimension_numbers<[1], [0], [0], [1], [0, 0, 1, 1], [], []>} : vector<8x32xf32>, vector<32x128xf32>, vector<8x128xf32> -> vector<8x128xf32>
    %658 = vector.broadcast %5 : vector<1x128xf32> to vector<8x128xf32>
    %659 = arith.addf %657, %658 : vector<8x128xf32>
    %660 = arith.index_cast %c7_i32 : i32 to index
    %c0_139 = arith.constant 0 : index
    %c0_140 = arith.constant 0 : index
    %661 = vector.load %arg9[%660, %c0_139, %c0_140] : memref<8x8x128xf32, #tpu.memory_space<vmem>>, vector<1x8x128xf32>
    %662 = vector.shape_cast %661 : vector<1x8x128xf32> to vector<8x128xf32>
    %663 = vector.shape_cast %659 : vector<8x128xf32> to vector<1x8x128xf32>
    tpu.vector_store %arg9[%660, %c0_139, %c0_140], %663 {strides = array<i32>} : memref<8x8x128xf32, #tpu.memory_space<vmem>>, vector<1x8x128xf32>,
    %c8_i32 = arith.constant 8 : i32
    return
  }
  func.func @transform_0(%arg0: i32) -> (i32, i32, i32) {
    %c0_i32 = arith.constant 0 : i32
    %c0_i32_0 = arith.constant 0 : i32
    %c0_i32_1 = arith.constant 0 : i32
    %c0_i32_2 = arith.constant 0 : i32
    return %c0_i32, %c0_i32_0, %c0_i32_1 : i32, i32, i32
  }
  func.func @transform_1(%arg0: i32) -> (i32, i32) {
    %c0_i32 = arith.constant 0 : i32
    %c0_i32_0 = arith.constant 0 : i32
    %c0_i32_1 = arith.constant 0 : i32
    return %c0_i32, %c0_i32_0 : i32, i32
  }
  func.func @transform_2(%arg0: i32) -> (i32, i32) {
    %c0_i32 = arith.constant 0 : i32
    %c0_i32_0 = arith.constant 0 : i32
    %c0_i32_1 = arith.constant 0 : i32
    return %c0_i32, %c0_i32_0 : i32, i32
  }
  func.func @transform_3(%arg0: i32) -> (i32, i32) {
    %c0_i32 = arith.constant 0 : i32
    %c0_i32_0 = arith.constant 0 : i32
    %c0_i32_1 = arith.constant 0 : i32
    return %c0_i32, %c0_i32_0 : i32, i32
  }
  func.func @transform_4(%arg0: i32) -> (i32, i32) {
    %c0_i32 = arith.constant 0 : i32
    %c0_i32_0 = arith.constant 0 : i32
    %c0_i32_1 = arith.constant 0 : i32
    return %c0_i32, %c0_i32_0 : i32, i32
  }
  func.func @transform_5(%arg0: i32) -> (i32, i32) {
    %c0_i32 = arith.constant 0 : i32
    %c0_i32_0 = arith.constant 0 : i32
    %c0_i32_1 = arith.constant 0 : i32
    return %c0_i32, %c0_i32_0 : i32, i32
  }
  func.func @transform_6(%arg0: i32) -> (i32, i32) {
    %c0_i32 = arith.constant 0 : i32
    %c0_i32_0 = arith.constant 0 : i32
    %c0_i32_1 = arith.constant 0 : i32
    return %c0_i32, %c0_i32_0 : i32, i32
  }
  func.func @transform_7(%arg0: i32) -> (i32, i32) {
    %c0_i32 = arith.constant 0 : i32
    %c0_i32_0 = arith.constant 0 : i32
    %c0_i32_1 = arith.constant 0 : i32
    return %c0_i32, %c0_i32_0 : i32, i32
  }
  func.func @transform_8(%arg0: i32) -> (i32, i32, i32) {
    %c0_i32 = arith.constant 0 : i32
    %c0_i32_0 = arith.constant 0 : i32
    %c0_i32_1 = arith.constant 0 : i32
    %c0_i32_2 = arith.constant 0 : i32
    return %c0_i32, %c0_i32_0, %c0_i32_1 : i32, i32, i32
  }
}

</mosaic_0001>

<llo_original>
// kernel: tpu_custom_call.1
$region0: #{tpu_custom_call.1}
  #allocation0 [shape = 'u32[]', space=smem, size = 0x4, offset = 0x4, fixed_abs, tag = 'smem constant byte address 0x4 - core index']
  #allocation1 [shape = 'u32[72,128]{1,0:T(1,128)}', space=vmem, size = 0x9000, scoped, tag = 'internal scratch']
  %s0 = inlined_call_operand.hbm [shape: f32[8,8,128], index: 0, kind: input, shape index: {}]
  %s1 = inlined_call_operand.vmem [shape: s32[8,1], index: 1, kind: input, shape index: {}]
  %s2 = inlined_call_operand.hbm [shape: f32[32,128], index: 2, kind: input, shape index: {}]
  %s3 = inlined_call_operand.hbm [shape: f32[32,128], index: 3, kind: input, shape index: {}]
  %s4 = inlined_call_operand.hbm [shape: f32[32,128], index: 4, kind: input, shape index: {}]
  %s5 = inlined_call_operand.vmem [shape: f32[1,128], index: 5, kind: input, shape index: {}]
  %s6 = inlined_call_operand.hbm [shape: f32[32,128], index: 6, kind: input, shape index: {}]
  %s7 = inlined_call_operand.vmem [shape: f32[1,128], index: 7, kind: input, shape index: {}]
  %s8 = inlined_call_operand.hbm [shape: f32[8,8,128], index: 8, kind: output, shape index: {}]
  %s9 = sld [smem:[#allocation0]]
  $region62: #{tpu_custom_call.1} parent=0
    _
  %s11 = ssub.s32 1, %s9
  %s12 = scalar_select 0, %s11, %s9
  $region1: #{tpu_custom_call.1} parent=0
    #allocation2 [shape = 'u8[32768]{0}', space=vmem, size = 0x8000, scoped, tag = 'input window, operand 0, single buffered']
    #allocation3 [shape = 's32[1]{0}', space=sflag, size = 0x4, scoped, tag = 'scoped memory for tpu_custom_call.1']
    #allocation4 [shape = 's32[1]{0}', space=sflag, size = 0x4, scoped, tag = 'scoped memory for tpu_custom_call.1']
    #allocation5 [shape = 'u8[16384]{0}', space=vmem, size = 0x4000, scoped, tag = 'input window, operand 2, single buffered']
    #allocation6 [shape = 's32[1]{0}', space=sflag, size = 0x4, scoped, tag = 'scoped memory for tpu_custom_call.1']
    #allocation7 [shape = 'u8[16384]{0}', space=vmem, size = 0x4000, scoped, tag = 'input window, operand 3, single buffered']
    #allocation8 [shape = 'u8[16384]{0}', space=vmem, size = 0x4000, scoped, tag = 'input window, operand 4, single buffered']
    #allocation9 [shape = 's32[1]{0}', space=sflag, size = 0x4, scoped, tag = 'scoped memory for tpu_custom_call.1']
    #allocation10 [shape = 'u8[16384]{0}', space=vmem, size = 0x4000, scoped, tag = 'input window, operand 6, single buffered']
    #allocation11 [shape = 'u8[32768]{0}', space=vmem, size = 0x8000, scoped, tag = 'output window, operand 0, single buffered']
    %13 = vsyncpa [#allocation3], 0
    %14 = vsyncpa [#allocation6], 0
    %15 = vsyncpa [#allocation9], 0
    %16 = vsyncpa [#allocation4], 0
    // Predicated region
    $region2: #{tpu_custom_call.1} parent=1 // pred_check
      _
    $region3: #{tpu_custom_call.1} parent=1 // pred_check_branch
      %18 = sbr.rel (0) target = $region5
    $region4: #{tpu_custom_call.1} parent=1 // pred_region
      %20 = vsyncadd [#allocation3], 0
      %s21 = sshll.u32 %s0, 4
      %s22 = int_to_ptr.hbm [resolvable:$true] %s21
      %s23 = sshll.u32 [#allocation2], 4
      %s24 = int_to_ptr.vmem [resolvable:$true] %s23
      %29 = dma.hbm_to_vmem [thread:$0]  %s22, 1024, %s24, [#allocation3], 128, 128, 8
    $region5: #{tpu_custom_call.1} parent=1 // pred_fallthru
      _
    // Predicated region
    $region6: #{tpu_custom_call.1} parent=1 // pred_check
      _
    $region7: #{tpu_custom_call.1} parent=1 // pred_check_branch
      %31 = sbr.rel (0) target = $region9
    $region8: #{tpu_custom_call.1} parent=1 // pred_region
      _
    $region9: #{tpu_custom_call.1} parent=1 // pred_fallthru
      _
    // Predicated region
    $region10: #{tpu_custom_call.1} parent=1 // pred_check
      _
    $region11: #{tpu_custom_call.1} parent=1 // pred_check_branch
      %33 = sbr.rel (0) target = $region13
    $region12: #{tpu_custom_call.1} parent=1 // pred_region
      %35 = vsyncadd [#allocation6], 0
      %s36 = sshll.u32 %s2, 4
      %s37 = int_to_ptr.hbm [resolvable:$true] %s36
      %s38 = sshll.u32 [#allocation5], 4
      %s39 = int_to_ptr.vmem [resolvable:$true] %s38
      %44 = dma.hbm_to_vmem [thread:$0]  %s37, 512, %s39, [#allocation6], 128, 128, 8
    $region13: #{tpu_custom_call.1} parent=1 // pred_fallthru
      _
    // Predicated region
    $region14: #{tpu_custom_call.1} parent=1 // pred_check
      _
    $region15: #{tpu_custom_call.1} parent=1 // pred_check_branch
      %46 = sbr.rel (0) target = $region17
    $region16: #{tpu_custom_call.1} parent=1 // pred_region
      %48 = vsyncadd [#allocation6], 0
      %s49 = sshll.u32 %s3, 4
      %s50 = int_to_ptr.hbm [resolvable:$true] %s49
      %s51 = sshll.u32 [#allocation7], 4
      %s52 = int_to_ptr.vmem [resolvable:$true] %s51
      %57 = dma.hbm_to_vmem [thread:$0]  %s50, 512, %s52, [#allocation6], 128, 128, 8
    $region17: #{tpu_custom_call.1} parent=1 // pred_fallthru
      _
    // Predicated region
    $region18: #{tpu_custom_call.1} parent=1 // pred_check
      _
    $region19: #{tpu_custom_call.1} parent=1 // pred_check_branch
      %59 = sbr.rel (0) target = $region21
    $region20: #{tpu_custom_call.1} parent=1 // pred_region
      %61 = vsyncadd [#allocation9], 0
      %s62 = sshll.u32 %s4, 4
      %s63 = int_to_ptr.hbm [resolvable:$true] %s62
      %s64 = sshll.u32 [#allocation8], 4
      %s65 = int_to_ptr.vmem [resolvable:$true] %s64
      %70 = dma.hbm_to_vmem [thread:$0]  %s63, 512, %s65, [#allocation9], 128, 128, 8
    $region21: #{tpu_custom_call.1} parent=1 // pred_fallthru
      _
    // Predicated region
    $region22: #{tpu_custom_call.1} parent=1 // pred_check
      _
    $region23: #{tpu_custom_call.1} parent=1 // pred_check_branch
      %72 = sbr.rel (0) target = $region25
    $region24: #{tpu_custom_call.1} parent=1 // pred_region
      _
    $region25: #{tpu_custom_call.1} parent=1 // pred_fallthru
      _
    // Predicated region
    $region26: #{tpu_custom_call.1} parent=1 // pred_check
      _
    $region27: #{tpu_custom_call.1} parent=1 // pred_check_branch
      %74 = sbr.rel (0) target = $region29
    $region28: #{tpu_custom_call.1} parent=1 // pred_region
      %76 = vsyncadd [#allocation9], 0
      %s77 = sshll.u32 %s6, 4
      %s78 = int_to_ptr.hbm [resolvable:$true] %s77
      %s79 = sshll.u32 [#allocation10], 4
      %s80 = int_to_ptr.vmem [resolvable:$true] %s79
      %85 = dma.hbm_to_vmem [thread:$0]  %s78, 512, %s80, [#allocation9], 128, 128, 8
    $region29: #{tpu_custom_call.1} parent=1 // pred_fallthru
      _
    // Predicated region
    $region30: #{tpu_custom_call.1} parent=1 // pred_check
      _
    $region31: #{tpu_custom_call.1} parent=1 // pred_check_branch
      %87 = sbr.rel (0) target = $region33
    $region32: #{tpu_custom_call.1} parent=1 // pred_region
      _
    $region33: #{tpu_custom_call.1} parent=1 // pred_fallthru
      _
    // Predicated region
    $region34: #{tpu_custom_call.1} parent=1 // pred_check
      _
    $region35: #{tpu_custom_call.1} parent=1 // pred_check_branch
      %89 = sbr.rel (0) target = $region37
    $region36: #{tpu_custom_call.1} parent=1 // pred_region
      %91 = dma.done [#allocation3], 1024
    $region37: #{tpu_custom_call.1} parent=1 // pred_fallthru
      _
    // Predicated region
    $region38: #{tpu_custom_call.1} parent=1 // pred_check
      _
    $region39: #{tpu_custom_call.1} parent=1 // pred_check_branch
      %93 = sbr.rel (0) target = $region41
    $region40: #{tpu_custom_call.1} parent=1 // pred_region
      %95 = dma.done [#allocation6], 512
    $region41: #{tpu_custom_call.1} parent=1 // pred_fallthru
      _
    // Predicated region
    $region42: #{tpu_custom_call.1} parent=1 // pred_check
      _
    $region43: #{tpu_custom_call.1} parent=1 // pred_check_branch
      %97 = sbr.rel (0) target = $region45
    $region44: #{tpu_custom_call.1} parent=1 // pred_region
      %99 = dma.done [#allocation6], 512
    $region45: #{tpu_custom_call.1} parent=1 // pred_fallthru
      _
    // Predicated region
    $region46: #{tpu_custom_call.1} parent=1 // pred_check
      _
    $region47: #{tpu_custom_call.1} parent=1 // pred_check_branch
      %101 = sbr.rel (0) target = $region49
    $region48: #{tpu_custom_call.1} parent=1 // pred_region
      %103 = dma.done [#allocation9], 512
    $region49: #{tpu_custom_call.1} parent=1 // pred_fallthru
      _
    // Predicated region
    $region50: #{tpu_custom_call.1} parent=1 // pred_check
      _
    $region51: #{tpu_custom_call.1} parent=1 // pred_check_branch
      %105 = sbr.rel (0) target = $region53
    $region52: #{tpu_custom_call.1} parent=1 // pred_region
      %107 = dma.done [#allocation9], 512
    $region53: #{tpu_custom_call.1} parent=1 // pred_fallthru
      _
    %v108 = vld [vmem:[#allocation5] sm:$0xff]
    %v109 = vld [vmem:[#allocation5 + $0x8] sm:$0xff]
    %v110 = vld [vmem:[#allocation5 + $0x10] sm:$0xff]
    %v111 = vld [vmem:[#allocation5 + $0x18] sm:$0xff]
    %v112 = vld [vmem:[#allocation7] sm:$0xff]
    %v113 = vld [vmem:[#allocation7 + $0x8] sm:$0xff]
    %v114 = vld [vmem:[#allocation7 + $0x10] sm:$0xff]
    %v115 = vld [vmem:[#allocation7 + $0x18] sm:$0xff]
    %v116 = vld [vmem:[#allocation8] sm:$0xff]
    %v117 = vld [vmem:[#allocation8 + $0x8] sm:$0xff]
    %v118 = vld [vmem:[#allocation8 + $0x10] sm:$0xff]
    %v119 = vld [vmem:[#allocation8 + $0x18] sm:$0xff]
    %v120 = vld [vmem:[%s5] sm:$0x1]
    %v121 = vld [vmem:[#allocation10] sm:$0xff]
    %v122 = vld [vmem:[#allocation10 + $0x8] sm:$0xff]
    %v123 = vld [vmem:[#allocation10 + $0x10] sm:$0xff]
    %v124 = vld [vmem:[#allocation10 + $0x18] sm:$0xff]
    %v125 = vld [vmem:[%s7] sm:$0x1]
    %v126 = vld [vmem:[%s1] sm:$0xff]
    %vm127 = vcmp.gt.s32.totalorder %v126, 0
    %v128 = vsel %vm127, 1.0, 0.0
    %v129 = vld [vmem:[#allocation2] sm:$0xff]
    %vm130 = vcmask 261120
    %v132 = vsel %vm130, 0.0, 0
    %134 = vmatpush.msra.mxu0 0.0
    %135 = vmatpush.msra.mxu0 0.0
    %136 = vmatpush.msra.mxu0 0.0
    %137 = vmatpush.msra.mxu0 0.0
    %138 = vmatpush.msra.mxu0 0.0
    %139 = vmatpush.msra.mxu0 0.0
    %140 = vmatpush.msra.mxu0 0.0
    %141 = vmatpush.msra.mxu0 0.0
    %142 = vmatpush.msra.mxu0 0.0
    %143 = vmatpush.msra.mxu0 0.0
    %144 = vmatpush.msra.mxu0 0.0
    %145 = vmatpush.msra.mxu0 0.0
    %146 = vmatpush.msra.mxu0 %v111
    %147 = vmatpush.msra.mxu0 %v110
    %148 = vmatpush.msra.mxu0 %v109
    %149 = vmatpush.msra.mxu0 %v108
    %150 = vmatmul.f32.gmra.mxu0 %v132
    %v151 = vpop.f32.mrf.mxu0
    %v152 = vadd.f32 0.0, %v151
    %153 = vdwg.mxu0
    %v154 = vadd.f32 %v129, %v152
    %v155 = vxor.u32 %v154, 2147483648
    %v156 = vmul.f32 %v155, 1.442695
    %v157 = vpow.pop %v156
    %v158 = vadd.f32 %v157, 1.0
    %v159 = vrcp.pop %v158
    %v160 = vmul.f32 %v158, %v159
    %v161 = vsub.f32 1.0, %v160
    %v162 = vmul.f32 %v159, %v161
    %v163 = vadd.f32 %v159, %v162
    %vm164 = vweird.f32 %v158
    %vm165 = vweird.f32 %v159
    %vm166 = vmor %vm164, %vm165
    %v167 = vsel %vm166, %v159, %v163
    %v168 = vand.u32 2147483647, %v158
    %vm169 = vcmp.eq.f32.partialorder %v168, 8.507059e+37
    %v170 = vand.u32 %v158, 2147483648
    %v171 = vor.u32 1.1754944e-38, %v170
    %v172 = vsel %vm169, %v171, %v167
    %v173 = vmul.f32 1.0, %v172
    %v174 = vtanh.pop %v154
    %v175 = vmul.f32 %v173, 0.0
    %177 = vrot.lane.b32.xlu0 %v174, 64
    %v178 = vpop.permute.xlu0 %177
    %v180 = vmul.f32 %v173, %v178
    %182 = vrot.lane.b32.xlu0 %v180, 32
    %v183 = vpop.permute.xlu0 %182
    %v185 = vadd.f32 %v175, %v183
    %v186 = vtanh.pop %v185
    %188 = vrot.lane.b32.xlu0 %v186, 64
    %v189 = vpop.permute.xlu0 %188
    %v191 = vmul.f32 %v173, %v189
    %193 = vset.pattern.permute.xlu0 0
    %194 = vperm.xlu0 %193, %v128
    %v195 = vpop.permute.xlu0 %194
    %v197 = vmul.f32 %v195, %v191
    %v198 = vsub.f32 1.0, %v128
    %200 = vset.pattern.permute.xlu0 0
    %201 = vperm.xlu0 %200, %v198
    %v202 = vpop.permute.xlu0 %201
    %v204 = vmul.f32 %v202, 0.0
    %v205 = vadd.f32 %v197, %v204
    %v206 = vmul.f32 %v195, %v185
    %v207 = vadd.f32 %v206, %v204
    %208 = vmatpush.msra.mxu0 0.0
    %209 = vmatpush.msra.mxu0 0.0
    %210 = vmatpush.msra.mxu0 0.0
    %211 = vmatpush.msra.mxu0 0.0
    %212 = vmatpush.msra.mxu0 0.0
    %213 = vmatpush.msra.mxu0 0.0
    %214 = vmatpush.msra.mxu0 0.0
    %215 = vmatpush.msra.mxu0 0.0
    %216 = vmatpush.msra.mxu0 0.0
    %217 = vmatpush.msra.mxu0 0.0
    %218 = vmatpush.msra.mxu0 0.0
    %219 = vmatpush.msra.mxu0 0.0
    %220 = vmatpush.msra.mxu0 %v119
    %221 = vmatpush.msra.mxu0 %v118
    %222 = vmatpush.msra.mxu0 %v117
    %223 = vmatpush.msra.mxu0 %v116
    %224 = vmatmul.f32.gmra.mxu0 %v132
    %v225 = vpop.f32.mrf.mxu0
    %v226 = vadd.f32 0.0, %v225
    %227 = vdwg.mxu0
    %229 = vrot.lane.b32.xlu0 %v205, 32
    %v230 = vpop.permute.xlu0 %229
    %v231 = vsel %vm130, %v230, 0
    %233 = vmatpush.msra.mxu0 0.0
    %234 = vmatpush.msra.mxu0 0.0
    %235 = vmatpush.msra.mxu0 0.0
    %236 = vmatpush.msra.mxu0 0.0
    %237 = vmatpush.msra.mxu0 0.0
    %238 = vmatpush.msra.mxu0 0.0
    %239 = vmatpush.msra.mxu0 0.0
    %240 = vmatpush.msra.mxu0 0.0
    %241 = vmatpush.msra.mxu0 0.0
    %242 = vmatpush.msra.mxu0 0.0
    %243 = vmatpush.msra.mxu0 0.0
    %244 = vmatpush.msra.mxu0 0.0
    %245 = vmatpush.msra.mxu0 %v115
    %246 = vmatpush.msra.mxu0 %v114
    %247 = vmatpush.msra.mxu0 %v113
    %248 = vmatpush.msra.mxu0 %v112
    %249 = vmatmul.f32.gmra.mxu0 %v231
    %v250 = vpop.f32.mrf.mxu0
    %v251 = vadd.f32 %v226, %v250
    %252 = vdwg.mxu0
    %v254 = vperm.slane %v120, 0
    %v256 = vadd.f32 %v251, %v254
    %v257 = vxor.u32 %v256, 2147483648
    %v258 = vmul.f32 %v257, 1.442695
    %v259 = vpow.pop %v258
    %v260 = vadd.f32 %v259, 1.0
    %v261 = vrcp.pop %v260
    %v262 = vmul.f32 %v260, %v261
    %v263 = vsub.f32 1.0, %v262
    %v264 = vmul.f32 %v261, %v263
    %v265 = vadd.f32 %v261, %v264
    %vm266 = vweird.f32 %v260
    %vm267 = vweird.f32 %v261
    %vm268 = vmor %vm266, %vm267
    %v269 = vsel %vm268, %v261, %v265
    %v270 = vand.u32 2147483647, %v260
    %vm271 = vcmp.eq.f32.partialorder %v270, 8.507059e+37
    %v272 = vand.u32 %v260, 2147483648
    %v273 = vor.u32 1.1754944e-38, %v272
    %v274 = vsel %vm271, %v273, %v269
    %v275 = vmul.f32 1.0, %v274
    %v276 = vtanh.pop %v256
    %v277 = vmul.f32 %v275, 0.0
    %279 = vrot.lane.b32.xlu0 %v276, 64
    %v280 = vpop.permute.xlu0 %279
    %v282 = vmul.f32 %v275, %v280
    %284 = vrot.lane.b32.xlu0 %v282, 32
    %v285 = vpop.permute.xlu0 %284
    %v287 = vadd.f32 %v277, %v285
    %v288 = vtanh.pop %v287
    %290 = vrot.lane.b32.xlu0 %v288, 64
    %v291 = vpop.permute.xlu0 %290
    %v293 = vmul.f32 %v275, %v291
    %v294 = vmul.f32 %v195, %v293
    %v295 = vadd.f32 %v294, %v204
    %v296 = vmul.f32 %v195, %v287
    %v297 = vadd.f32 %v296, %v204
    %v299 = vperm.slane %v125, 0
    %302 = vrot.lane.b32.xlu0 %v294, 32
    %v303 = vpop.permute.xlu0 %302
    %v304 = vsel %vm130, %v303, 0
    %306 = vmatpush.msra.mxu0 0.0
    %307 = vmatpush.msra.mxu0 0.0
    %308 = vmatpush.msra.mxu0 0.0
    %309 = vmatpush.msra.mxu0 0.0
    %310 = vmatpush.msra.mxu0 0.0
    %311 = vmatpush.msra.mxu0 0.0
    %312 = vmatpush.msra.mxu0 0.0
    %313 = vmatpush.msra.mxu0 0.0
    %314 = vmatpush.msra.mxu0 0.0
    %315 = vmatpush.msra.mxu0 0.0
    %316 = vmatpush.msra.mxu0 0.0
    %317 = vmatpush.msra.mxu0 0.0
    %318 = vmatpush.msra.mxu0 %v124
    %319 = vmatpush.msra.mxu0 %v123
    %320 = vmatpush.msra.mxu0 %v122
    %321 = vmatpush.msra.mxu0 %v121
    %322 = vmatmul.f32.gmra.mxu0 %v304
    %v323 = vpop.f32.mrf.mxu0
    %v324 = vadd.f32 %v299, %v323
    %325 = vdwg.mxu0
    %326 = vst [vmem:[#allocation11] sm:$0xff] %v324
    %vm327 = vcmp.gt.s32.totalorder %v126, 1
    %v328 = vsel %vm327, 1.0, 0.0
    %s329 = scalar_lea.vmem [#allocation2], 8
    %v330 = vld [vmem:[%s329] sm:$0xff]
    %331 = vmatpush.msra.mxu0 0.0
    %332 = vmatpush.msra.mxu0 0.0
    %333 = vmatpush.msra.mxu0 0.0
    %334 = vmatpush.msra.mxu0 0.0
    %335 = vmatpush.msra.mxu0 0.0
    %336 = vmatpush.msra.mxu0 0.0
    %337 = vmatpush.msra.mxu0 0.0
    %338 = vmatpush.msra.mxu0 0.0
    %339 = vmatpush.msra.mxu0 0.0
    %340 = vmatpush.msra.mxu0 0.0
    %341 = vmatpush.msra.mxu0 0.0
    %342 = vmatpush.msra.mxu0 0.0
    %343 = vmatpush.msra.mxu0 %v111
    %344 = vmatpush.msra.mxu0 %v110
    %345 = vmatpush.msra.mxu0 %v109
    %346 = vmatpush.msra.mxu0 %v108
    %347 = vmatmul.f32.gmra.mxu0 %v231
    %v348 = vpop.f32.mrf.mxu0
    %v349 = vadd.f32 0.0, %v348
    %350 = vdwg.mxu0
    %v351 = vadd.f32 %v330, %v349
    %v352 = vxor.u32 %v351, 2147483648
    %v353 = vmul.f32 %v352, 1.442695
    %v354 = vpow.pop %v353
    %v355 = vadd.f32 %v354, 1.0
    %v356 = vrcp.pop %v355
    %v357 = vmul.f32 %v355, %v356
    %v358 = vsub.f32 1.0, %v357
    %v359 = vmul.f32 %v356, %v358
    %v360 = vadd.f32 %v356, %v359
    %vm361 = vweird.f32 %v355
    %vm362 = vweird.f32 %v356
    %vm363 = vmor %vm361, %vm362
    %v364 = vsel %vm363, %v356, %v360
    %v365 = vand.u32 2147483647, %v355
    %vm366 = vcmp.eq.f32.partialorder %v365, 8.507059e+37
    %v367 = vand.u32 %v355, 2147483648
    %v368 = vor.u32 1.1754944e-38, %v367
    %v369 = vsel %vm366, %v368, %v364
    %v370 = vmul.f32 1.0, %v369
    %v371 = vtanh.pop %v351
    %v372 = vmul.f32 %v370, %v207
    %374 = vrot.lane.b32.xlu0 %v371, 64
    %v375 = vpop.permute.xlu0 %374
    %v377 = vmul.f32 %v370, %v375
    %379 = vrot.lane.b32.xlu0 %v377, 32
    %v380 = vpop.permute.xlu0 %379
    %v382 = vadd.f32 %v372, %v380
    %v383 = vtanh.pop %v382
    %385 = vrot.lane.b32.xlu0 %v383, 64
    %v386 = vpop.permute.xlu0 %385
    %v388 = vmul.f32 %v370, %v386
    %390 = vset.pattern.permute.xlu0 0
    %391 = vperm.xlu0 %390, %v328
    %v392 = vpop.permute.xlu0 %391
    %v394 = vmul.f32 %v392, %v388
    %v395 = vsub.f32 1.0, %v328
    %397 = vset.pattern.permute.xlu0 0
    %398 = vperm.xlu0 %397, %v395
    %v399 = vpop.permute.xlu0 %398
    %v401 = vmul.f32 %v399, %v205
    %v402 = vadd.f32 %v394, %v401
    %v403 = vmul.f32 %v392, %v382
    %v404 = vmul.f32 %v399, %v207
    %v405 = vadd.f32 %v403, %v404
    %407 = vrot.lane.b32.xlu0 %v295, 32
    %v408 = vpop.permute.xlu0 %407
    %v409 = vsel %vm130, %v408, 0
    %411 = vmatpush.msra.mxu0 0.0
    %412 = vmatpush.msra.mxu0 0.0
    %413 = vmatpush.msra.mxu0 0.0
    %414 = vmatpush.msra.mxu0 0.0
    %415 = vmatpush.msra.mxu0 0.0
    %416 = vmatpush.msra.mxu0 0.0
    %417 = vmatpush.msra.mxu0 0.0
    %418 = vmatpush.msra.mxu0 0.0
    %419 = vmatpush.msra.mxu0 0.0
    %420 = vmatpush.msra.mxu0 0.0
    %421 = vmatpush.msra.mxu0 0.0
    %422 = vmatpush.msra.mxu0 0.0
    %423 = vmatpush.msra.mxu0 %v119
    %424 = vmatpush.msra.mxu0 %v118
    %425 = vmatpush.msra.mxu0 %v117
    %426 = vmatpush.msra.mxu0 %v116
    %427 = vmatmul.f32.gmra.mxu0 %v409
    %v428 = vpop.f32.mrf.mxu0
    %v429 = vadd.f32 0.0, %v428
    %430 = vdwg.mxu0
    %432 = vrot.lane.b32.xlu0 %v402, 32
    %v433 = vpop.permute.xlu0 %432
    %v434 = vsel %vm130, %v433, 0
    %436 = vmatpush.msra.mxu0 0.0
    %437 = vmatpush.msra.mxu0 0.0
    %438 = vmatpush.msra.mxu0 0.0
    %439 = vmatpush.msra.mxu0 0.0
    %440 = vmatpush.msra.mxu0 0.0
    %441 = vmatpush.msra.mxu0 0.0
    %442 = vmatpush.msra.mxu0 0.0
    %443 = vmatpush.msra.mxu0 0.0
    %444 = vmatpush.msra.mxu0 0.0
    %445 = vmatpush.msra.mxu0 0.0
    %446 = vmatpush.msra.mxu0 0.0
    %447 = vmatpush.msra.mxu0 0.0
    %448 = vmatpush.msra.mxu0 %v115
    %449 = vmatpush.msra.mxu0 %v114
    %450 = vmatpush.msra.mxu0 %v113
    %451 = vmatpush.msra.mxu0 %v112
    %452 = vmatmul.f32.gmra.mxu0 %v434
    %v453 = vpop.f32.mrf.mxu0
    %v454 = vadd.f32 %v429, %v453
    %455 = vdwg.mxu0
    %v456 = vadd.f32 %v454, %v254
    %v457 = vxor.u32 %v456, 2147483648
    %v458 = vmul.f32 %v457, 1.442695
    %v459 = vpow.pop %v458
    %v460 = vadd.f32 %v459, 1.0
    %v461 = vrcp.pop %v460
    %v462 = vmul.f32 %v460, %v461
    %v463 = vsub.f32 1.0, %v462
    %v464 = vmul.f32 %v461, %v463
    %v465 = vadd.f32 %v461, %v464
    %vm466 = vweird.f32 %v460
    %vm467 = vweird.f32 %v461
    %vm468 = vmor %vm466, %vm467
    %v469 = vsel %vm468, %v461, %v465
    %v470 = vand.u32 2147483647, %v460
    %vm471 = vcmp.eq.f32.partialorder %v470, 8.507059e+37
    %v472 = vand.u32 %v460, 2147483648
    %v473 = vor.u32 1.1754944e-38, %v472
    %v474 = vsel %vm471, %v473, %v469
    %v475 = vmul.f32 1.0, %v474
    %v476 = vtanh.pop %v456
    %v477 = vmul.f32 %v475, %v297
    %479 = vrot.lane.b32.xlu0 %v476, 64
    %v480 = vpop.permute.xlu0 %479
    %v482 = vmul.f32 %v475, %v480
    %484 = vrot.lane.b32.xlu0 %v482, 32
    %v485 = vpop.permute.xlu0 %484
    %v487 = vadd.f32 %v477, %v485
    %v488 = vtanh.pop %v487
    %490 = vrot.lane.b32.xlu0 %v488, 64
    %v491 = vpop.permute.xlu0 %490
    %v493 = vmul.f32 %v475, %v491
    %v494 = vmul.f32 %v392, %v493
    %v495 = vmul.f32 %v399, %v295
    %v496 = vadd.f32 %v494, %v495
    %v497 = vmul.f32 %v392, %v487
    %v498 = vmul.f32 %v399, %v297
    %v499 = vadd.f32 %v497, %v498
    %501 = vrot.lane.b32.xlu0 %v494, 32
    %v502 = vpop.permute.xlu0 %501
    %v503 = vsel %vm130, %v502, 0
    %505 = vmatpush.msra.mxu0 0.0
    %506 = vmatpush.msra.mxu0 0.0
    %507 = vmatpush.msra.mxu0 0.0
    %508 = vmatpush.msra.mxu0 0.0
    %509 = vmatpush.msra.mxu0 0.0
    %510 = vmatpush.msra.mxu0 0.0
    %511 = vmatpush.msra.mxu0 0.0
    %512 = vmatpush.msra.mxu0 0.0
    %513 = vmatpush.msra.mxu0 0.0
    %514 = vmatpush.msra.mxu0 0.0
    %515 = vmatpush.msra.mxu0 0.0
    %516 = vmatpush.msra.mxu0 0.0
    %517 = vmatpush.msra.mxu0 %v124
    %518 = vmatpush.msra.mxu0 %v123
    %519 = vmatpush.msra.mxu0 %v122
    %520 = vmatpush.msra.mxu0 %v121
    %521 = vmatmul.f32.gmra.mxu0 %v503
    %v522 = vpop.f32.mrf.mxu0
    %v523 = vadd.f32 %v299, %v522
    %524 = vdwg.mxu0
    %s525 = scalar_lea.vmem [#allocation11], 8
    %526 = vst [vmem:[%s525] sm:$0xff] %v523
    %vm527 = vcmp.gt.s32.totalorder %v126, 2
    %v528 = vsel %vm527, 1.0, 0.0
    %s529 = scalar_lea.vmem [#allocation2], 16
    %v530 = vld [vmem:[%s529] sm:$0xff]
    %531 = vmatpush.msra.mxu0 0.0
    %532 = vmatpush.msra.mxu0 0.0
    %533 = vmatpush.msra.mxu0 0.0
    %534 = vmatpush.msra.mxu0 0.0
    %535 = vmatpush.msra.mxu0 0.0
    %536 = vmatpush.msra.mxu0 0.0
    %537 = vmatpush.msra.mxu0 0.0
    %538 = vmatpush.msra.mxu0 0.0
    %539 = vmatpush.msra.mxu0 0.0
    %540 = vmatpush.msra.mxu0 0.0
    %541 = vmatpush.msra.mxu0 0.0
    %542 = vmatpush.msra.mxu0 0.0
    %543 = vmatpush.msra.mxu0 %v111
    %544 = vmatpush.msra.mxu0 %v110
    %545 = vmatpush.msra.mxu0 %v109
    %546 = vmatpush.msra.mxu0 %v108
    %547 = vmatmul.f32.gmra.mxu0 %v434
    %v548 = vpop.f32.mrf.mxu0
    %v549 = vadd.f32 0.0, %v548
    %550 = vdwg.mxu0
    %v551 = vadd.f32 %v530, %v549
    %v552 = vxor.u32 %v551, 2147483648
    %v553 = vmul.f32 %v552, 1.442695
    %v554 = vpow.pop %v553
    %v555 = vadd.f32 %v554, 1.0
    %v556 = vrcp.pop %v555
    %v557 = vmul.f32 %v555, %v556
    %v558 = vsub.f32 1.0, %v557
    %v559 = vmul.f32 %v556, %v558
    %v560 = vadd.f32 %v556, %v559
    %vm561 = vweird.f32 %v555
    %vm562 = vweird.f32 %v556
    %vm563 = vmor %vm561, %vm562
    %v564 = vsel %vm563, %v556, %v560
    %v565 = vand.u32 2147483647, %v555
    %vm566 = vcmp.eq.f32.partialorder %v565, 8.507059e+37
    %v567 = vand.u32 %v555, 2147483648
    %v568 = vor.u32 1.1754944e-38, %v567
    %v569 = vsel %vm566, %v568, %v564
    %v570 = vmul.f32 1.0, %v569
    %v571 = vtanh.pop %v551
    %v572 = vmul.f32 %v570, %v405
    %574 = vrot.lane.b32.xlu0 %v571, 64
    %v575 = vpop.permute.xlu0 %574
    %v577 = vmul.f32 %v570, %v575
    %579 = vrot.lane.b32.xlu0 %v577, 32
    %v580 = vpop.permute.xlu0 %579
    %v582 = vadd.f32 %v572, %v580
    %v583 = vtanh.pop %v582
    %585 = vrot.lane.b32.xlu0 %v583, 64
    %v586 = vpop.permute.xlu0 %585
    %v588 = vmul.f32 %v570, %v586
    %590 = vset.pattern.permute.xlu0 0
    %591 = vperm.xlu0 %590, %v528
    %v592 = vpop.permute.xlu0 %591
    %v594 = vmul.f32 %v592, %v588
    %v595 = vsub.f32 1.0, %v528
    %597 = vset.pattern.permute.xlu0 0
    %598 = vperm.xlu0 %597, %v595
    %v599 = vpop.permute.xlu0 %598
    %v601 = vmul.f32 %v599, %v402
    %v602 = vadd.f32 %v594, %v601
    %v603 = vmul.f32 %v592, %v582
    %v604 = vmul.f32 %v599, %v405
    %v605 = vadd.f32 %v603, %v604
    %607 = vrot.lane.b32.xlu0 %v496, 32
    %v608 = vpop.permute.xlu0 %607
    %v609 = vsel %vm130, %v608, 0
    %611 = vmatpush.msra.mxu0 0.0
    %612 = vmatpush.msra.mxu0 0.0
    %613 = vmatpush.msra.mxu0 0.0
    %614 = vmatpush.msra.mxu0 0.0
    %615 = vmatpush.msra.mxu0 0.0
    %616 = vmatpush.msra.mxu0 0.0
    %617 = vmatpush.msra.mxu0 0.0
    %618 = vmatpush.msra.mxu0 0.0
    %619 = vmatpush.msra.mxu0 0.0
    %620 = vmatpush.msra.mxu0 0.0
    %621 = vmatpush.msra.mxu0 0.0
    %622 = vmatpush.msra.mxu0 0.0
    %623 = vmatpush.msra.mxu0 %v119
    %624 = vmatpush.msra.mxu0 %v118
    %625 = vmatpush.msra.mxu0 %v117
    %626 = vmatpush.msra.mxu0 %v116
    %627 = vmatmul.f32.gmra.mxu0 %v609
    %v628 = vpop.f32.mrf.mxu0
    %v629 = vadd.f32 0.0, %v628
    %630 = vdwg.mxu0
    %632 = vrot.lane.b32.xlu0 %v602, 32
    %v633 = vpop.permute.xlu0 %632
    %v634 = vsel %vm130, %v633, 0
    %636 = vmatpush.msra.mxu0 0.0
    %637 = vmatpush.msra.mxu0 0.0
    %638 = vmatpush.msra.mxu0 0.0
    %639 = vmatpush.msra.mxu0 0.0
    %640 = vmatpush.msra.mxu0 0.0
    %641 = vmatpush.msra.mxu0 0.0
    %642 = vmatpush.msra.mxu0 0.0
    %643 = vmatpush.msra.mxu0 0.0
    %644 = vmatpush.msra.mxu0 0.0
    %645 = vmatpush.msra.mxu0 0.0
    %646 = vmatpush.msra.mxu0 0.0
    %647 = vmatpush.msra.mxu0 0.0
    %648 = vmatpush.msra.mxu0 %v115
    %649 = vmatpush.msra.mxu0 %v114
    %650 = vmatpush.msra.mxu0 %v113
    %651 = vmatpush.msra.mxu0 %v112
    %652 = vmatmul.f32.gmra.mxu0 %v634
    %v653 = vpop.f32.mrf.mxu0
    %v654 = vadd.f32 %v629, %v653
    %655 = vdwg.mxu0
    %v656 = vadd.f32 %v654, %v254
    %v657 = vxor.u32 %v656, 2147483648
    %v658 = vmul.f32 %v657, 1.442695
    %v659 = vpow.pop %v658
    %v660 = vadd.f32 %v659, 1.0
    %v661 = vrcp.pop %v660
    %v662 = vmul.f32 %v660, %v661
    %v663 = vsub.f32 1.0, %v662
    %v664 = vmul.f32 %v661, %v663
    %v665 = vadd.f32 %v661, %v664
    %vm666 = vweird.f32 %v660
    %vm667 = vweird.f32 %v661
    %vm668 = vmor %vm666, %vm667
    %v669 = vsel %vm668, %v661, %v665
    %v670 = vand.u32 2147483647, %v660
    %vm671 = vcmp.eq.f32.partialorder %v670, 8.507059e+37
    %v672 = vand.u32 %v660, 2147483648
    %v673 = vor.u32 1.1754944e-38, %v672
    %v674 = vsel %vm671, %v673, %v669
    %v675 = vmul.f32 1.0, %v674
    %v676 = vtanh.pop %v656
    %v677 = vmul.f32 %v675, %v499
    %679 = vrot.lane.b32.xlu0 %v676, 64
    %v680 = vpop.permute.xlu0 %679
    %v682 = vmul.f32 %v675, %v680
    %684 = vrot.lane.b32.xlu0 %v682, 32
    %v685 = vpop.permute.xlu0 %684
    %v687 = vadd.f32 %v677, %v685
    %v688 = vtanh.pop %v687
    %690 = vrot.lane.b32.xlu0 %v688, 64
    %v691 = vpop.permute.xlu0 %690
    %v693 = vmul.f32 %v675, %v691
    %v694 = vmul.f32 %v592, %v693
    %v695 = vmul.f32 %v599, %v496
    %v696 = vadd.f32 %v694, %v695
    %v697 = vmul.f32 %v592, %v687
    %v698 = vmul.f32 %v599, %v499
    %v699 = vadd.f32 %v697, %v698
    %701 = vrot.lane.b32.xlu0 %v694, 32
    %v702 = vpop.permute.xlu0 %701
    %v703 = vsel %vm130, %v702, 0
    %705 = vmatpush.msra.mxu0 0.0
    %706 = vmatpush.msra.mxu0 0.0
    %707 = vmatpush.msra.mxu0 0.0
    %708 = vmatpush.msra.mxu0 0.0
    %709 = vmatpush.msra.mxu0 0.0
    %710 = vmatpush.msra.mxu0 0.0
    %711 = vmatpush.msra.mxu0 0.0
    %712 = vmatpush.msra.mxu0 0.0
    %713 = vmatpush.msra.mxu0 0.0
    %714 = vmatpush.msra.mxu0 0.0
    %715 = vmatpush.msra.mxu0 0.0
    %716 = vmatpush.msra.mxu0 0.0
    %717 = vmatpush.msra.mxu0 %v124
    %718 = vmatpush.msra.mxu0 %v123
    %719 = vmatpush.msra.mxu0 %v122
    %720 = vmatpush.msra.mxu0 %v121
    %721 = vmatmul.f32.gmra.mxu0 %v703
    %v722 = vpop.f32.mrf.mxu0
    %v723 = vadd.f32 %v299, %v722
    %724 = vdwg.mxu0
    %s725 = scalar_lea.vmem [#allocation11], 16
    %726 = vst [vmem:[%s725] sm:$0xff] %v723
    %vm727 = vcmp.gt.s32.totalorder %v126, 3
    %v728 = vsel %vm727, 1.0, 0.0
    %s729 = scalar_lea.vmem [#allocation2], 24
    %v730 = vld [vmem:[%s729] sm:$0xff]
    %731 = vmatpush.msra.mxu0 0.0
    %732 = vmatpush.msra.mxu0 0.0
    %733 = vmatpush.msra.mxu0 0.0
    %734 = vmatpush.msra.mxu0 0.0
    %735 = vmatpush.msra.mxu0 0.0
    %736 = vmatpush.msra.mxu0 0.0
    %737 = vmatpush.msra.mxu0 0.0
    %738 = vmatpush.msra.mxu0 0.0
    %739 = vmatpush.msra.mxu0 0.0
    %740 = vmatpush.msra.mxu0 0.0
    %741 = vmatpush.msra.mxu0 0.0
    %742 = vmatpush.msra.mxu0 0.0
    %743 = vmatpush.msra.mxu0 %v111
    %744 = vmatpush.msra.mxu0 %v110
    %745 = vmatpush.msra.mxu0 %v109
    %746 = vmatpush.msra.mxu0 %v108
    %747 = vmatmul.f32.gmra.mxu0 %v634
    %v748 = vpop.f32.mrf.mxu0
    %v749 = vadd.f32 0.0, %v748
    %750 = vdwg.mxu0
    %v751 = vadd.f32 %v730, %v749
    %v752 = vxor.u32 %v751, 2147483648
    %v753 = vmul.f32 %v752, 1.442695
    %v754 = vpow.pop %v753
    %v755 = vadd.f32 %v754, 1.0
    %v756 = vrcp.pop %v755
    %v757 = vmul.f32 %v755, %v756
    %v758 = vsub.f32 1.0, %v757
    %v759 = vmul.f32 %v756, %v758
    %v760 = vadd.f32 %v756, %v759
    %vm761 = vweird.f32 %v755
    %vm762 = vweird.f32 %v756
    %vm763 = vmor %vm761, %vm762
    %v764 = vsel %vm763, %v756, %v760
    %v765 = vand.u32 2147483647, %v755
    %vm766 = vcmp.eq.f32.partialorder %v765, 8.507059e+37
    %v767 = vand.u32 %v755, 2147483648
    %v768 = vor.u32 1.1754944e-38, %v767
    %v769 = vsel %vm766, %v768, %v764
    %v770 = vmul.f32 1.0, %v769
    %v771 = vtanh.pop %v751
    %v772 = vmul.f32 %v770, %v605
    %774 = vrot.lane.b32.xlu0 %v771, 64
    %v775 = vpop.permute.xlu0 %774
    %v777 = vmul.f32 %v770, %v775
    %779 = vrot.lane.b32.xlu0 %v777, 32
    %v780 = vpop.permute.xlu0 %779
    %v782 = vadd.f32 %v772, %v780
    %v783 = vtanh.pop %v782
    %785 = vrot.lane.b32.xlu0 %v783, 64
    %v786 = vpop.permute.xlu0 %785
    %v788 = vmul.f32 %v770, %v786
    %790 = vset.pattern.permute.xlu0 0
    %791 = vperm.xlu0 %790, %v728
    %v792 = vpop.permute.xlu0 %791
    %v794 = vmul.f32 %v792, %v788
    %v795 = vsub.f32 1.0, %v728
    %797 = vset.pattern.permute.xlu0 0
    %798 = vperm.xlu0 %797, %v795
    %v799 = vpop.permute.xlu0 %798
    %v801 = vmul.f32 %v799, %v602
    %v802 = vadd.f32 %v794, %v801
    %v803 = vmul.f32 %v792, %v782
    %v804 = vmul.f32 %v799, %v605
    %v805 = vadd.f32 %v803, %v804
    %807 = vrot.lane.b32.xlu0 %v696, 32
    %v808 = vpop.permute.xlu0 %807
    %v809 = vsel %vm130, %v808, 0
    %811 = vmatpush.msra.mxu0 0.0
    %812 = vmatpush.msra.mxu0 0.0
    %813 = vmatpush.msra.mxu0 0.0
    %814 = vmatpush.msra.mxu0 0.0
    %815 = vmatpush.msra.mxu0 0.0
    %816 = vmatpush.msra.mxu0 0.0
    %817 = vmatpush.msra.mxu0 0.0
    %818 = vmatpush.msra.mxu0 0.0
    %819 = vmatpush.msra.mxu0 0.0
    %820 = vmatpush.msra.mxu0 0.0
    %821 = vmatpush.msra.mxu0 0.0
    %822 = vmatpush.msra.mxu0 0.0
    %823 = vmatpush.msra.mxu0 %v119
    %824 = vmatpush.msra.mxu0 %v118
    %825 = vmatpush.msra.mxu0 %v117
    %826 = vmatpush.msra.mxu0 %v116
    %827 = vmatmul.f32.gmra.mxu0 %v809
    %v828 = vpop.f32.mrf.mxu0
    %v829 = vadd.f32 0.0, %v828
    %830 = vdwg.mxu0
    %832 = vrot.lane.b32.xlu0 %v802, 32
    %v833 = vpop.permute.xlu0 %832
    %v834 = vsel %vm130, %v833, 0
    %836 = vmatpush.msra.mxu0 0.0
    %837 = vmatpush.msra.mxu0 0.0
    %838 = vmatpush.msra.mxu0 0.0
    %839 = vmatpush.msra.mxu0 0.0
    %840 = vmatpush.msra.mxu0 0.0
    %841 = vmatpush.msra.mxu0 0.0
    %842 = vmatpush.msra.mxu0 0.0
    %843 = vmatpush.msra.mxu0 0.0
    %844 = vmatpush.msra.mxu0 0.0
    %845 = vmatpush.msra.mxu0 0.0
    %846 = vmatpush.msra.mxu0 0.0
    %847 = vmatpush.msra.mxu0 0.0
    %848 = vmatpush.msra.mxu0 %v115
    %849 = vmatpush.msra.mxu0 %v114
    %850 = vmatpush.msra.mxu0 %v113
    %851 = vmatpush.msra.mxu0 %v112
    %852 = vmatmul.f32.gmra.mxu0 %v834
    %v853 = vpop.f32.mrf.mxu0
    %v854 = vadd.f32 %v829, %v853
    %855 = vdwg.mxu0
    %v856 = vadd.f32 %v854, %v254
    %v857 = vxor.u32 %v856, 2147483648
    %v858 = vmul.f32 %v857, 1.442695
    %v859 = vpow.pop %v858
    %v860 = vadd.f32 %v859, 1.0
    %v861 = vrcp.pop %v860
    %v862 = vmul.f32 %v860, %v861
    %v863 = vsub.f32 1.0, %v862
    %v864 = vmul.f32 %v861, %v863
    %v865 = vadd.f32 %v861, %v864
    %vm866 = vweird.f32 %v860
    %vm867 = vweird.f32 %v861
    %vm868 = vmor %vm866, %vm867
    %v869 = vsel %vm868, %v861, %v865
    %v870 = vand.u32 2147483647, %v860
    %vm871 = vcmp.eq.f32.partialorder %v870, 8.507059e+37
    %v872 = vand.u32 %v860, 2147483648
    %v873 = vor.u32 1.1754944e-38, %v872
    %v874 = vsel %vm871, %v873, %v869
    %v875 = vmul.f32 1.0, %v874
    %v876 = vtanh.pop %v856
    %v877 = vmul.f32 %v875, %v699
    %879 = vrot.lane.b32.xlu0 %v876, 64
    %v880 = vpop.permute.xlu0 %879
    %v882 = vmul.f32 %v875, %v880
    %884 = vrot.lane.b32.xlu0 %v882, 32
    %v885 = vpop.permute.xlu0 %884
    %v887 = vadd.f32 %v877, %v885
    %v888 = vtanh.pop %v887
    %890 = vrot.lane.b32.xlu0 %v888, 64
    %v891 = vpop.permute.xlu0 %890
    %v893 = vmul.f32 %v875, %v891
    %v894 = vmul.f32 %v792, %v893
    %v895 = vmul.f32 %v799, %v696
    %v896 = vadd.f32 %v894, %v895
    %v897 = vmul.f32 %v792, %v887
    %v898 = vmul.f32 %v799, %v699
    %v899 = vadd.f32 %v897, %v898
    %901 = vrot.lane.b32.xlu0 %v894, 32
    %v902 = vpop.permute.xlu0 %901
    %v903 = vsel %vm130, %v902, 0
    %905 = vmatpush.msra.mxu0 0.0
    %906 = vmatpush.msra.mxu0 0.0
    %907 = vmatpush.msra.mxu0 0.0
    %908 = vmatpush.msra.mxu0 0.0
    %909 = vmatpush.msra.mxu0 0.0
    %910 = vmatpush.msra.mxu0 0.0
    %911 = vmatpush.msra.mxu0 0.0
    %912 = vmatpush.msra.mxu0 0.0
    %913 = vmatpush.msra.mxu0 0.0
    %914 = vmatpush.msra.mxu0 0.0
    %915 = vmatpush.msra.mxu0 0.0
    %916 = vmatpush.msra.mxu0 0.0
    %917 = vmatpush.msra.mxu0 %v124
    %918 = vmatpush.msra.mxu0 %v123
    %919 = vmatpush.msra.mxu0 %v122
    %920 = vmatpush.msra.mxu0 %v121
    %921 = vmatmul.f32.gmra.mxu0 %v903
    %v922 = vpop.f32.mrf.mxu0
    %v923 = vadd.f32 %v299, %v922
    %924 = vdwg.mxu0
    %s925 = scalar_lea.vmem [#allocation11], 24
    %926 = vst [vmem:[%s925] sm:$0xff] %v923
    %vm927 = vcmp.gt.s32.totalorder %v126, 4
    %v928 = vsel %vm927, 1.0, 0.0
    %s929 = scalar_lea.vmem [#allocation2], 32
    %v930 = vld [vmem:[%s929] sm:$0xff]
    %931 = vmatpush.msra.mxu0 0.0
    %932 = vmatpush.msra.mxu0 0.0
    %933 = vmatpush.msra.mxu0 0.0
    %934 = vmatpush.msra.mxu0 0.0
    %935 = vmatpush.msra.mxu0 0.0
    %936 = vmatpush.msra.mxu0 0.0
    %937 = vmatpush.msra.mxu0 0.0
    %938 = vmatpush.msra.mxu0 0.0
    %939 = vmatpush.msra.mxu0 0.0
    %940 = vmatpush.msra.mxu0 0.0
    %941 = vmatpush.msra.mxu0 0.0
    %942 = vmatpush.msra.mxu0 0.0
    %943 = vmatpush.msra.mxu0 %v111
    %944 = vmatpush.msra.mxu0 %v110
    %945 = vmatpush.msra.mxu0 %v109
    %946 = vmatpush.msra.mxu0 %v108
    %947 = vmatmul.f32.gmra.mxu0 %v834
    %v948 = vpop.f32.mrf.mxu0
    %v949 = vadd.f32 0.0, %v948
    %950 = vdwg.mxu0
    %v951 = vadd.f32 %v930, %v949
    %v952 = vxor.u32 %v951, 2147483648
    %v953 = vmul.f32 %v952, 1.442695
    %v954 = vpow.pop %v953
    %v955 = vadd.f32 %v954, 1.0
    %v956 = vrcp.pop %v955
    %v957 = vmul.f32 %v955, %v956
    %v958 = vsub.f32 1.0, %v957
    %v959 = vmul.f32 %v956, %v958
    %v960 = vadd.f32 %v956, %v959
    %vm961 = vweird.f32 %v955
    %vm962 = vweird.f32 %v956
    %vm963 = vmor %vm961, %vm962
    %v964 = vsel %vm963, %v956, %v960
    %v965 = vand.u32 2147483647, %v955
    %vm966 = vcmp.eq.f32.partialorder %v965, 8.507059e+37
    %v967 = vand.u32 %v955, 2147483648
    %v968 = vor.u32 1.1754944e-38, %v967
    %v969 = vsel %vm966, %v968, %v964
    %v970 = vmul.f32 1.0, %v969
    %v971 = vtanh.pop %v951
    %v972 = vmul.f32 %v970, %v805
    %974 = vrot.lane.b32.xlu0 %v971, 64
    %v975 = vpop.permute.xlu0 %974
    %v977 = vmul.f32 %v970, %v975
    %979 = vrot.lane.b32.xlu0 %v977, 32
    %v980 = vpop.permute.xlu0 %979
    %v982 = vadd.f32 %v972, %v980
    %v983 = vtanh.pop %v982
    %985 = vrot.lane.b32.xlu0 %v983, 64
    %v986 = vpop.permute.xlu0 %985
    %v988 = vmul.f32 %v970, %v986
    %990 = vset.pattern.permute.xlu0 0
    %991 = vperm.xlu0 %990, %v928
    %v992 = vpop.permute.xlu0 %991
    %v994 = vmul.f32 %v992, %v988
    %v995 = vsub.f32 1.0, %v928
    %997 = vset.pattern.permute.xlu0 0
    %998 = vperm.xlu0 %997, %v995
    %v999 = vpop.permute.xlu0 %998
    %v1001 = vmul.f32 %v999, %v802
    %v1002 = vadd.f32 %v994, %v1001
    %v1003 = vmul.f32 %v992, %v982
    %v1004 = vmul.f32 %v999, %v805
    %v1005 = vadd.f32 %v1003, %v1004
    %1007 = vrot.lane.b32.xlu0 %v896, 32
    %v1008 = vpop.permute.xlu0 %1007
    %v1009 = vsel %vm130, %v1008, 0
    %1011 = vmatpush.msra.mxu0 0.0
    %1012 = vmatpush.msra.mxu0 0.0
    %1013 = vmatpush.msra.mxu0 0.0
    %1014 = vmatpush.msra.mxu0 0.0
    %1015 = vmatpush.msra.mxu0 0.0
    %1016 = vmatpush.msra.mxu0 0.0
    %1017 = vmatpush.msra.mxu0 0.0
    %1018 = vmatpush.msra.mxu0 0.0
    %1019 = vmatpush.msra.mxu0 0.0
    %1020 = vmatpush.msra.mxu0 0.0
    %1021 = vmatpush.msra.mxu0 0.0
    %1022 = vmatpush.msra.mxu0 0.0
    %1023 = vmatpush.msra.mxu0 %v119
    %1024 = vmatpush.msra.mxu0 %v118
    %1025 = vmatpush.msra.mxu0 %v117
    %1026 = vmatpush.msra.mxu0 %v116
    %1027 = vmatmul.f32.gmra.mxu0 %v1009
    %v1028 = vpop.f32.mrf.mxu0
    %v1029 = vadd.f32 0.0, %v1028
    %1030 = vdwg.mxu0
    %1032 = vrot.lane.b32.xlu0 %v1002, 32
    %v1033 = vpop.permute.xlu0 %1032
    %v1034 = vsel %vm130, %v1033, 0
    %1036 = vmatpush.msra.mxu0 0.0
    %1037 = vmatpush.msra.mxu0 0.0
    %1038 = vmatpush.msra.mxu0 0.0
    %1039 = vmatpush.msra.mxu0 0.0
    %1040 = vmatpush.msra.mxu0 0.0
    %1041 = vmatpush.msra.mxu0 0.0
    %1042 = vmatpush.msra.mxu0 0.0
    %1043 = vmatpush.msra.mxu0 0.0
    %1044 = vmatpush.msra.mxu0 0.0
    %1045 = vmatpush.msra.mxu0 0.0
    %1046 = vmatpush.msra.mxu0 0.0
    %1047 = vmatpush.msra.mxu0 0.0
    %1048 = vmatpush.msra.mxu0 %v115
    %1049 = vmatpush.msra.mxu0 %v114
    %1050 = vmatpush.msra.mxu0 %v113
    %1051 = vmatpush.msra.mxu0 %v112
    %1052 = vmatmul.f32.gmra.mxu0 %v1034
    %v1053 = vpop.f32.mrf.mxu0
    %v1054 = vadd.f32 %v1029, %v1053
    %1055 = vdwg.mxu0
    %v1056 = vadd.f32 %v1054, %v254
    %v1057 = vxor.u32 %v1056, 2147483648
    %v1058 = vmul.f32 %v1057, 1.442695
    %v1059 = vpow.pop %v1058
    %v1060 = vadd.f32 %v1059, 1.0
    %v1061 = vrcp.pop %v1060
    %v1062 = vmul.f32 %v1060, %v1061
    %v1063 = vsub.f32 1.0, %v1062
    %v1064 = vmul.f32 %v1061, %v1063
    %v1065 = vadd.f32 %v1061, %v1064
    %vm1066 = vweird.f32 %v1060
    %vm1067 = vweird.f32 %v1061
    %vm1068 = vmor %vm1066, %vm1067
    %v1069 = vsel %vm1068, %v1061, %v1065
    %v1070 = vand.u32 2147483647, %v1060
    %vm1071 = vcmp.eq.f32.partialorder %v1070, 8.507059e+37
    %v1072 = vand.u32 %v1060, 2147483648
    %v1073 = vor.u32 1.1754944e-38, %v1072
    %v1074 = vsel %vm1071, %v1073, %v1069
    %v1075 = vmul.f32 1.0, %v1074
    %v1076 = vtanh.pop %v1056
    %v1077 = vmul.f32 %v1075, %v899
    %1079 = vrot.lane.b32.xlu0 %v1076, 64
    %v1080 = vpop.permute.xlu0 %1079
    %v1082 = vmul.f32 %v1075, %v1080
    %1084 = vrot.lane.b32.xlu0 %v1082, 32
    %v1085 = vpop.permute.xlu0 %1084
    %v1087 = vadd.f32 %v1077, %v1085
    %v1088 = vtanh.pop %v1087
    %1090 = vrot.lane.b32.xlu0 %v1088, 64
    %v1091 = vpop.permute.xlu0 %1090
    %v1093 = vmul.f32 %v1075, %v1091
    %v1094 = vmul.f32 %v992, %v1093
    %v1095 = vmul.f32 %v999, %v896
    %v1096 = vadd.f32 %v1094, %v1095
    %v1097 = vmul.f32 %v992, %v1087
    %v1098 = vmul.f32 %v999, %v899
    %v1099 = vadd.f32 %v1097, %v1098
    %1101 = vrot.lane.b32.xlu0 %v1094, 32
    %v1102 = vpop.permute.xlu0 %1101
    %v1103 = vsel %vm130, %v1102, 0
    %1105 = vmatpush.msra.mxu0 0.0
    %1106 = vmatpush.msra.mxu0 0.0
    %1107 = vmatpush.msra.mxu0 0.0
    %1108 = vmatpush.msra.mxu0 0.0
    %1109 = vmatpush.msra.mxu0 0.0
    %1110 = vmatpush.msra.mxu0 0.0
    %1111 = vmatpush.msra.mxu0 0.0
    %1112 = vmatpush.msra.mxu0 0.0
    %1113 = vmatpush.msra.mxu0 0.0
    %1114 = vmatpush.msra.mxu0 0.0
    %1115 = vmatpush.msra.mxu0 0.0
    %1116 = vmatpush.msra.mxu0 0.0
    %1117 = vmatpush.msra.mxu0 %v124
    %1118 = vmatpush.msra.mxu0 %v123
    %1119 = vmatpush.msra.mxu0 %v122
    %1120 = vmatpush.msra.mxu0 %v121
    %1121 = vmatmul.f32.gmra.mxu0 %v1103
    %v1122 = vpop.f32.mrf.mxu0
    %v1123 = vadd.f32 %v299, %v1122
    %1124 = vdwg.mxu0
    %s1125 = scalar_lea.vmem [#allocation11], 32
    %1126 = vst [vmem:[%s1125] sm:$0xff] %v1123
    %vm1127 = vcmp.gt.s32.totalorder %v126, 5
    %v1128 = vsel %vm1127, 1.0, 0.0
    %s1129 = scalar_lea.vmem [#allocation2], 40
    %v1130 = vld [vmem:[%s1129] sm:$0xff]
    %1131 = vmatpush.msra.mxu0 0.0
    %1132 = vmatpush.msra.mxu0 0.0
    %1133 = vmatpush.msra.mxu0 0.0
    %1134 = vmatpush.msra.mxu0 0.0
    %1135 = vmatpush.msra.mxu0 0.0
    %1136 = vmatpush.msra.mxu0 0.0
    %1137 = vmatpush.msra.mxu0 0.0
    %1138 = vmatpush.msra.mxu0 0.0
    %1139 = vmatpush.msra.mxu0 0.0
    %1140 = vmatpush.msra.mxu0 0.0
    %1141 = vmatpush.msra.mxu0 0.0
    %1142 = vmatpush.msra.mxu0 0.0
    %1143 = vmatpush.msra.mxu0 %v111
    %1144 = vmatpush.msra.mxu0 %v110
    %1145 = vmatpush.msra.mxu0 %v109
    %1146 = vmatpush.msra.mxu0 %v108
    %1147 = vmatmul.f32.gmra.mxu0 %v1034
    %v1148 = vpop.f32.mrf.mxu0
    %v1149 = vadd.f32 0.0, %v1148
    %1150 = vdwg.mxu0
    %v1151 = vadd.f32 %v1130, %v1149
    %v1152 = vxor.u32 %v1151, 2147483648
    %v1153 = vmul.f32 %v1152, 1.442695
    %v1154 = vpow.pop %v1153
    %v1155 = vadd.f32 %v1154, 1.0
    %v1156 = vrcp.pop %v1155
    %v1157 = vmul.f32 %v1155, %v1156
    %v1158 = vsub.f32 1.0, %v1157
    %v1159 = vmul.f32 %v1156, %v1158
    %v1160 = vadd.f32 %v1156, %v1159
    %vm1161 = vweird.f32 %v1155
    %vm1162 = vweird.f32 %v1156
    %vm1163 = vmor %vm1161, %vm1162
    %v1164 = vsel %vm1163, %v1156, %v1160
    %v1165 = vand.u32 2147483647, %v1155
    %vm1166 = vcmp.eq.f32.partialorder %v1165, 8.507059e+37
    %v1167 = vand.u32 %v1155, 2147483648
    %v1168 = vor.u32 1.1754944e-38, %v1167
    %v1169 = vsel %vm1166, %v1168, %v1164
    %v1170 = vmul.f32 1.0, %v1169
    %v1171 = vtanh.pop %v1151
    %v1172 = vmul.f32 %v1170, %v1005
    %1174 = vrot.lane.b32.xlu0 %v1171, 64
    %v1175 = vpop.permute.xlu0 %1174
    %v1177 = vmul.f32 %v1170, %v1175
    %1179 = vrot.lane.b32.xlu0 %v1177, 32
    %v1180 = vpop.permute.xlu0 %1179
    %v1182 = vadd.f32 %v1172, %v1180
    %v1183 = vtanh.pop %v1182
    %1185 = vrot.lane.b32.xlu0 %v1183, 64
    %v1186 = vpop.permute.xlu0 %1185
    %v1188 = vmul.f32 %v1170, %v1186
    %1190 = vset.pattern.permute.xlu0 0
    %1191 = vperm.xlu0 %1190, %v1128
    %v1192 = vpop.permute.xlu0 %1191
    %v1194 = vmul.f32 %v1192, %v1188
    %v1195 = vsub.f32 1.0, %v1128
    %1197 = vset.pattern.permute.xlu0 0
    %1198 = vperm.xlu0 %1197, %v1195
    %v1199 = vpop.permute.xlu0 %1198
    %v1201 = vmul.f32 %v1199, %v1002
    %v1202 = vadd.f32 %v1194, %v1201
    %v1203 = vmul.f32 %v1192, %v1182
    %v1204 = vmul.f32 %v1199, %v1005
    %v1205 = vadd.f32 %v1203, %v1204
    %1207 = vrot.lane.b32.xlu0 %v1096, 32
    %v1208 = vpop.permute.xlu0 %1207
    %v1209 = vsel %vm130, %v1208, 0
    %1211 = vmatpush.msra.mxu0 0.0
    %1212 = vmatpush.msra.mxu0 0.0
    %1213 = vmatpush.msra.mxu0 0.0
    %1214 = vmatpush.msra.mxu0 0.0
    %1215 = vmatpush.msra.mxu0 0.0
    %1216 = vmatpush.msra.mxu0 0.0
    %1217 = vmatpush.msra.mxu0 0.0
    %1218 = vmatpush.msra.mxu0 0.0
    %1219 = vmatpush.msra.mxu0 0.0
    %1220 = vmatpush.msra.mxu0 0.0
    %1221 = vmatpush.msra.mxu0 0.0
    %1222 = vmatpush.msra.mxu0 0.0
    %1223 = vmatpush.msra.mxu0 %v119
    %1224 = vmatpush.msra.mxu0 %v118
    %1225 = vmatpush.msra.mxu0 %v117
    %1226 = vmatpush.msra.mxu0 %v116
    %1227 = vmatmul.f32.gmra.mxu0 %v1209
    %v1228 = vpop.f32.mrf.mxu0
    %v1229 = vadd.f32 0.0, %v1228
    %1230 = vdwg.mxu0
    %1232 = vrot.lane.b32.xlu0 %v1202, 32
    %v1233 = vpop.permute.xlu0 %1232
    %v1234 = vsel %vm130, %v1233, 0
    %1236 = vmatpush.msra.mxu0 0.0
    %1237 = vmatpush.msra.mxu0 0.0
    %1238 = vmatpush.msra.mxu0 0.0
    %1239 = vmatpush.msra.mxu0 0.0
    %1240 = vmatpush.msra.mxu0 0.0
    %1241 = vmatpush.msra.mxu0 0.0
    %1242 = vmatpush.msra.mxu0 0.0
    %1243 = vmatpush.msra.mxu0 0.0
    %1244 = vmatpush.msra.mxu0 0.0
    %1245 = vmatpush.msra.mxu0 0.0
    %1246 = vmatpush.msra.mxu0 0.0
    %1247 = vmatpush.msra.mxu0 0.0
    %1248 = vmatpush.msra.mxu0 %v115
    %1249 = vmatpush.msra.mxu0 %v114
    %1250 = vmatpush.msra.mxu0 %v113
    %1251 = vmatpush.msra.mxu0 %v112
    %1252 = vmatmul.f32.gmra.mxu0 %v1234
    %v1253 = vpop.f32.mrf.mxu0
    %v1254 = vadd.f32 %v1229, %v1253
    %1255 = vdwg.mxu0
    %v1256 = vadd.f32 %v1254, %v254
    %v1257 = vxor.u32 %v1256, 2147483648
    %v1258 = vmul.f32 %v1257, 1.442695
    %v1259 = vpow.pop %v1258
    %v1260 = vadd.f32 %v1259, 1.0
    %v1261 = vrcp.pop %v1260
    %v1262 = vmul.f32 %v1260, %v1261
    %v1263 = vsub.f32 1.0, %v1262
    %v1264 = vmul.f32 %v1261, %v1263
    %v1265 = vadd.f32 %v1261, %v1264
    %vm1266 = vweird.f32 %v1260
    %vm1267 = vweird.f32 %v1261
    %vm1268 = vmor %vm1266, %vm1267
    %v1269 = vsel %vm1268, %v1261, %v1265
    %v1270 = vand.u32 2147483647, %v1260
    %vm1271 = vcmp.eq.f32.partialorder %v1270, 8.507059e+37
    %v1272 = vand.u32 %v1260, 2147483648
    %v1273 = vor.u32 1.1754944e-38, %v1272
    %v1274 = vsel %vm1271, %v1273, %v1269
    %v1275 = vmul.f32 1.0, %v1274
    %v1276 = vtanh.pop %v1256
    %v1277 = vmul.f32 %v1275, %v1099
    %1279 = vrot.lane.b32.xlu0 %v1276, 64
    %v1280 = vpop.permute.xlu0 %1279
    %v1282 = vmul.f32 %v1275, %v1280
    %1284 = vrot.lane.b32.xlu0 %v1282, 32
    %v1285 = vpop.permute.xlu0 %1284
    %v1287 = vadd.f32 %v1277, %v1285
    %v1288 = vtanh.pop %v1287
    %1290 = vrot.lane.b32.xlu0 %v1288, 64
    %v1291 = vpop.permute.xlu0 %1290
    %v1293 = vmul.f32 %v1275, %v1291
    %v1294 = vmul.f32 %v1192, %v1293
    %v1295 = vmul.f32 %v1199, %v1096
    %v1296 = vadd.f32 %v1294, %v1295
    %v1297 = vmul.f32 %v1192, %v1287
    %v1298 = vmul.f32 %v1199, %v1099
    %v1299 = vadd.f32 %v1297, %v1298
    %1301 = vrot.lane.b32.xlu0 %v1294, 32
    %v1302 = vpop.permute.xlu0 %1301
    %v1303 = vsel %vm130, %v1302, 0
    %1305 = vmatpush.msra.mxu0 0.0
    %1306 = vmatpush.msra.mxu0 0.0
    %1307 = vmatpush.msra.mxu0 0.0
    %1308 = vmatpush.msra.mxu0 0.0
    %1309 = vmatpush.msra.mxu0 0.0
    %1310 = vmatpush.msra.mxu0 0.0
    %1311 = vmatpush.msra.mxu0 0.0
    %1312 = vmatpush.msra.mxu0 0.0
    %1313 = vmatpush.msra.mxu0 0.0
    %1314 = vmatpush.msra.mxu0 0.0
    %1315 = vmatpush.msra.mxu0 0.0
    %1316 = vmatpush.msra.mxu0 0.0
    %1317 = vmatpush.msra.mxu0 %v124
    %1318 = vmatpush.msra.mxu0 %v123
    %1319 = vmatpush.msra.mxu0 %v122
    %1320 = vmatpush.msra.mxu0 %v121
    %1321 = vmatmul.f32.gmra.mxu0 %v1303
    %v1322 = vpop.f32.mrf.mxu0
    %v1323 = vadd.f32 %v299, %v1322
    %1324 = vdwg.mxu0
    %s1325 = scalar_lea.vmem [#allocation11], 40
    %1326 = vst [vmem:[%s1325] sm:$0xff] %v1323
    %vm1327 = vcmp.gt.s32.totalorder %v126, 6
    %v1328 = vsel %vm1327, 1.0, 0.0
    %s1329 = scalar_lea.vmem [#allocation2], 48
    %v1330 = vld [vmem:[%s1329] sm:$0xff]
    %1331 = vmatpush.msra.mxu0 0.0
    %1332 = vmatpush.msra.mxu0 0.0
    %1333 = vmatpush.msra.mxu0 0.0
    %1334 = vmatpush.msra.mxu0 0.0
    %1335 = vmatpush.msra.mxu0 0.0
    %1336 = vmatpush.msra.mxu0 0.0
    %1337 = vmatpush.msra.mxu0 0.0
    %1338 = vmatpush.msra.mxu0 0.0
    %1339 = vmatpush.msra.mxu0 0.0
    %1340 = vmatpush.msra.mxu0 0.0
    %1341 = vmatpush.msra.mxu0 0.0
    %1342 = vmatpush.msra.mxu0 0.0
    %1343 = vmatpush.msra.mxu0 %v111
    %1344 = vmatpush.msra.mxu0 %v110
    %1345 = vmatpush.msra.mxu0 %v109
    %1346 = vmatpush.msra.mxu0 %v108
    %1347 = vmatmul.f32.gmra.mxu0 %v1234
    %v1348 = vpop.f32.mrf.mxu0
    %v1349 = vadd.f32 0.0, %v1348
    %1350 = vdwg.mxu0
    %v1351 = vadd.f32 %v1330, %v1349
    %v1352 = vxor.u32 %v1351, 2147483648
    %v1353 = vmul.f32 %v1352, 1.442695
    %v1354 = vpow.pop %v1353
    %v1355 = vadd.f32 %v1354, 1.0
    %v1356 = vrcp.pop %v1355
    %v1357 = vmul.f32 %v1355, %v1356
    %v1358 = vsub.f32 1.0, %v1357
    %v1359 = vmul.f32 %v1356, %v1358
    %v1360 = vadd.f32 %v1356, %v1359
    %vm1361 = vweird.f32 %v1355
    %vm1362 = vweird.f32 %v1356
    %vm1363 = vmor %vm1361, %vm1362
    %v1364 = vsel %vm1363, %v1356, %v1360
    %v1365 = vand.u32 2147483647, %v1355
    %vm1366 = vcmp.eq.f32.partialorder %v1365, 8.507059e+37
    %v1367 = vand.u32 %v1355, 2147483648
    %v1368 = vor.u32 1.1754944e-38, %v1367
    %v1369 = vsel %vm1366, %v1368, %v1364
    %v1370 = vmul.f32 1.0, %v1369
    %v1371 = vtanh.pop %v1351
    %v1372 = vmul.f32 %v1370, %v1205
    %1374 = vrot.lane.b32.xlu0 %v1371, 64
    %v1375 = vpop.permute.xlu0 %1374
    %v1377 = vmul.f32 %v1370, %v1375
    %1379 = vrot.lane.b32.xlu0 %v1377, 32
    %v1380 = vpop.permute.xlu0 %1379
    %v1382 = vadd.f32 %v1372, %v1380
    %v1383 = vtanh.pop %v1382
    %1385 = vrot.lane.b32.xlu0 %v1383, 64
    %v1386 = vpop.permute.xlu0 %1385
    %v1388 = vmul.f32 %v1370, %v1386
    %1390 = vset.pattern.permute.xlu0 0
    %1391 = vperm.xlu0 %1390, %v1328
    %v1392 = vpop.permute.xlu0 %1391
    %v1394 = vmul.f32 %v1392, %v1388
    %v1395 = vsub.f32 1.0, %v1328
    %1397 = vset.pattern.permute.xlu0 0
    %1398 = vperm.xlu0 %1397, %v1395
    %v1399 = vpop.permute.xlu0 %1398
    %v1401 = vmul.f32 %v1399, %v1202
    %v1402 = vadd.f32 %v1394, %v1401
    %v1403 = vmul.f32 %v1392, %v1382
    %v1404 = vmul.f32 %v1399, %v1205
    %v1405 = vadd.f32 %v1403, %v1404
    %1407 = vrot.lane.b32.xlu0 %v1296, 32
    %v1408 = vpop.permute.xlu0 %1407
    %v1409 = vsel %vm130, %v1408, 0
    %1411 = vmatpush.msra.mxu0 0.0
    %1412 = vmatpush.msra.mxu0 0.0
    %1413 = vmatpush.msra.mxu0 0.0
    %1414 = vmatpush.msra.mxu0 0.0
    %1415 = vmatpush.msra.mxu0 0.0
    %1416 = vmatpush.msra.mxu0 0.0
    %1417 = vmatpush.msra.mxu0 0.0
    %1418 = vmatpush.msra.mxu0 0.0
    %1419 = vmatpush.msra.mxu0 0.0
    %1420 = vmatpush.msra.mxu0 0.0
    %1421 = vmatpush.msra.mxu0 0.0
    %1422 = vmatpush.msra.mxu0 0.0
    %1423 = vmatpush.msra.mxu0 %v119
    %1424 = vmatpush.msra.mxu0 %v118
    %1425 = vmatpush.msra.mxu0 %v117
    %1426 = vmatpush.msra.mxu0 %v116
    %1427 = vmatmul.f32.gmra.mxu0 %v1409
    %v1428 = vpop.f32.mrf.mxu0
    %v1429 = vadd.f32 0.0, %v1428
    %1430 = vdwg.mxu0
    %1432 = vrot.lane.b32.xlu0 %v1402, 32
    %v1433 = vpop.permute.xlu0 %1432
    %v1434 = vsel %vm130, %v1433, 0
    %1436 = vmatpush.msra.mxu0 0.0
    %1437 = vmatpush.msra.mxu0 0.0
    %1438 = vmatpush.msra.mxu0 0.0
    %1439 = vmatpush.msra.mxu0 0.0
    %1440 = vmatpush.msra.mxu0 0.0
    %1441 = vmatpush.msra.mxu0 0.0
    %1442 = vmatpush.msra.mxu0 0.0
    %1443 = vmatpush.msra.mxu0 0.0
    %1444 = vmatpush.msra.mxu0 0.0
    %1445 = vmatpush.msra.mxu0 0.0
    %1446 = vmatpush.msra.mxu0 0.0
    %1447 = vmatpush.msra.mxu0 0.0
    %1448 = vmatpush.msra.mxu0 %v115
    %1449 = vmatpush.msra.mxu0 %v114
    %1450 = vmatpush.msra.mxu0 %v113
    %1451 = vmatpush.msra.mxu0 %v112
    %1452 = vmatmul.f32.gmra.mxu0 %v1434
    %v1453 = vpop.f32.mrf.mxu0
    %v1454 = vadd.f32 %v1429, %v1453
    %1455 = vdwg.mxu0
    %v1456 = vadd.f32 %v1454, %v254
    %v1457 = vxor.u32 %v1456, 2147483648
    %v1458 = vmul.f32 %v1457, 1.442695
    %v1459 = vpow.pop %v1458
    %v1460 = vadd.f32 %v1459, 1.0
    %v1461 = vrcp.pop %v1460
    %v1462 = vmul.f32 %v1460, %v1461
    %v1463 = vsub.f32 1.0, %v1462
    %v1464 = vmul.f32 %v1461, %v1463
    %v1465 = vadd.f32 %v1461, %v1464
    %vm1466 = vweird.f32 %v1460
    %vm1467 = vweird.f32 %v1461
    %vm1468 = vmor %vm1466, %vm1467
    %v1469 = vsel %vm1468, %v1461, %v1465
    %v1470 = vand.u32 2147483647, %v1460
    %vm1471 = vcmp.eq.f32.partialorder %v1470, 8.507059e+37
    %v1472 = vand.u32 %v1460, 2147483648
    %v1473 = vor.u32 1.1754944e-38, %v1472
    %v1474 = vsel %vm1471, %v1473, %v1469
    %v1475 = vmul.f32 1.0, %v1474
    %v1476 = vtanh.pop %v1456
    %v1477 = vmul.f32 %v1475, %v1299
    %1479 = vrot.lane.b32.xlu0 %v1476, 64
    %v1480 = vpop.permute.xlu0 %1479
    %v1482 = vmul.f32 %v1475, %v1480
    %1484 = vrot.lane.b32.xlu0 %v1482, 32
    %v1485 = vpop.permute.xlu0 %1484
    %v1487 = vadd.f32 %v1477, %v1485
    %v1488 = vtanh.pop %v1487
    %1490 = vrot.lane.b32.xlu0 %v1488, 64
    %v1491 = vpop.permute.xlu0 %1490
    %v1493 = vmul.f32 %v1475, %v1491
    %v1494 = vmul.f32 %v1392, %v1493
    %v1495 = vmul.f32 %v1399, %v1296
    %v1496 = vadd.f32 %v1494, %v1495
    %v1497 = vmul.f32 %v1392, %v1487
    %v1498 = vmul.f32 %v1399, %v1299
    %v1499 = vadd.f32 %v1497, %v1498
    %1501 = vrot.lane.b32.xlu0 %v1494, 32
    %v1502 = vpop.permute.xlu0 %1501
    %v1503 = vsel %vm130, %v1502, 0
    %1505 = vmatpush.msra.mxu0 0.0
    %1506 = vmatpush.msra.mxu0 0.0
    %1507 = vmatpush.msra.mxu0 0.0
    %1508 = vmatpush.msra.mxu0 0.0
    %1509 = vmatpush.msra.mxu0 0.0
    %1510 = vmatpush.msra.mxu0 0.0
    %1511 = vmatpush.msra.mxu0 0.0
    %1512 = vmatpush.msra.mxu0 0.0
    %1513 = vmatpush.msra.mxu0 0.0
    %1514 = vmatpush.msra.mxu0 0.0
    %1515 = vmatpush.msra.mxu0 0.0
    %1516 = vmatpush.msra.mxu0 0.0
    %1517 = vmatpush.msra.mxu0 %v124
    %1518 = vmatpush.msra.mxu0 %v123
    %1519 = vmatpush.msra.mxu0 %v122
    %1520 = vmatpush.msra.mxu0 %v121
    %1521 = vmatmul.f32.gmra.mxu0 %v1503
    %v1522 = vpop.f32.mrf.mxu0
    %v1523 = vadd.f32 %v299, %v1522
    %1524 = vdwg.mxu0
    %s1525 = scalar_lea.vmem [#allocation11], 48
    %1526 = vst [vmem:[%s1525] sm:$0xff] %v1523
    %vm1527 = vcmp.gt.s32.totalorder %v126, 7
    %v1528 = vsel %vm1527, 1.0, 0.0
    %s1529 = scalar_lea.vmem [#allocation2], 56
    %v1530 = vld [vmem:[%s1529] sm:$0xff]
    %1531 = vmatpush.msra.mxu0 0.0
    %1532 = vmatpush.msra.mxu0 0.0
    %1533 = vmatpush.msra.mxu0 0.0
    %1534 = vmatpush.msra.mxu0 0.0
    %1535 = vmatpush.msra.mxu0 0.0
    %1536 = vmatpush.msra.mxu0 0.0
    %1537 = vmatpush.msra.mxu0 0.0
    %1538 = vmatpush.msra.mxu0 0.0
    %1539 = vmatpush.msra.mxu0 0.0
    %1540 = vmatpush.msra.mxu0 0.0
    %1541 = vmatpush.msra.mxu0 0.0
    %1542 = vmatpush.msra.mxu0 0.0
    %1543 = vmatpush.msra.mxu0 %v111
    %1544 = vmatpush.msra.mxu0 %v110
    %1545 = vmatpush.msra.mxu0 %v109
    %1546 = vmatpush.msra.mxu0 %v108
    %1547 = vmatmul.f32.gmra.mxu0 %v1434
    %v1548 = vpop.f32.mrf.mxu0
    %v1549 = vadd.f32 0.0, %v1548
    %1550 = vdwg.mxu0
    %v1551 = vadd.f32 %v1530, %v1549
    %v1552 = vxor.u32 %v1551, 2147483648
    %v1553 = vmul.f32 %v1552, 1.442695
    %v1554 = vpow.pop %v1553
    %v1555 = vadd.f32 %v1554, 1.0
    %v1556 = vrcp.pop %v1555
    %v1557 = vmul.f32 %v1555, %v1556
    %v1558 = vsub.f32 1.0, %v1557
    %v1559 = vmul.f32 %v1556, %v1558
    %v1560 = vadd.f32 %v1556, %v1559
    %vm1561 = vweird.f32 %v1555
    %vm1562 = vweird.f32 %v1556
    %vm1563 = vmor %vm1561, %vm1562
    %v1564 = vsel %vm1563, %v1556, %v1560
    %v1565 = vand.u32 2147483647, %v1555
    %vm1566 = vcmp.eq.f32.partialorder %v1565, 8.507059e+37
    %v1567 = vand.u32 %v1555, 2147483648
    %v1568 = vor.u32 1.1754944e-38, %v1567
    %v1569 = vsel %vm1566, %v1568, %v1564
    %v1570 = vmul.f32 1.0, %v1569
    %v1571 = vtanh.pop %v1551
    %v1572 = vmul.f32 %v1570, %v1405
    %1574 = vrot.lane.b32.xlu0 %v1571, 64
    %v1575 = vpop.permute.xlu0 %1574
    %v1577 = vmul.f32 %v1570, %v1575
    %1579 = vrot.lane.b32.xlu0 %v1577, 32
    %v1580 = vpop.permute.xlu0 %1579
    %v1582 = vadd.f32 %v1572, %v1580
    %v1583 = vtanh.pop %v1582
    %1585 = vrot.lane.b32.xlu0 %v1583, 64
    %v1586 = vpop.permute.xlu0 %1585
    %v1588 = vmul.f32 %v1570, %v1586
    %1590 = vset.pattern.permute.xlu0 0
    %1591 = vperm.xlu0 %1590, %v1528
    %v1592 = vpop.permute.xlu0 %1591
    %v1594 = vmul.f32 %v1592, %v1588
    %v1595 = vsub.f32 1.0, %v1528
    %1597 = vset.pattern.permute.xlu0 0
    %1598 = vperm.xlu0 %1597, %v1595
    %v1599 = vpop.permute.xlu0 %1598
    %v1601 = vmul.f32 %v1599, %v1402
    %v1602 = vadd.f32 %v1594, %v1601
    %1604 = vrot.lane.b32.xlu0 %v1496, 32
    %v1605 = vpop.permute.xlu0 %1604
    %v1606 = vsel %vm130, %v1605, 0
    %1608 = vmatpush.msra.mxu0 0.0
    %1609 = vmatpush.msra.mxu0 0.0
    %1610 = vmatpush.msra.mxu0 0.0
    %1611 = vmatpush.msra.mxu0 0.0
    %1612 = vmatpush.msra.mxu0 0.0
    %1613 = vmatpush.msra.mxu0 0.0
    %1614 = vmatpush.msra.mxu0 0.0
    %1615 = vmatpush.msra.mxu0 0.0
    %1616 = vmatpush.msra.mxu0 0.0
    %1617 = vmatpush.msra.mxu0 0.0
    %1618 = vmatpush.msra.mxu0 0.0
    %1619 = vmatpush.msra.mxu0 0.0
    %1620 = vmatpush.msra.mxu0 %v119
    %1621 = vmatpush.msra.mxu0 %v118
    %1622 = vmatpush.msra.mxu0 %v117
    %1623 = vmatpush.msra.mxu0 %v116
    %1624 = vmatmul.f32.gmra.mxu0 %v1606
    %v1625 = vpop.f32.mrf.mxu0
    %v1626 = vadd.f32 0.0, %v1625
    %1627 = vdwg.mxu0
    %1629 = vrot.lane.b32.xlu0 %v1602, 32
    %v1630 = vpop.permute.xlu0 %1629
    %v1631 = vsel %vm130, %v1630, 0
    %1633 = vmatpush.msra.mxu0 0.0
    %1634 = vmatpush.msra.mxu0 0.0
    %1635 = vmatpush.msra.mxu0 0.0
    %1636 = vmatpush.msra.mxu0 0.0
    %1637 = vmatpush.msra.mxu0 0.0
    %1638 = vmatpush.msra.mxu0 0.0
    %1639 = vmatpush.msra.mxu0 0.0
    %1640 = vmatpush.msra.mxu0 0.0
    %1641 = vmatpush.msra.mxu0 0.0
    %1642 = vmatpush.msra.mxu0 0.0
    %1643 = vmatpush.msra.mxu0 0.0
    %1644 = vmatpush.msra.mxu0 0.0
    %1645 = vmatpush.msra.mxu0 %v115
    %1646 = vmatpush.msra.mxu0 %v114
    %1647 = vmatpush.msra.mxu0 %v113
    %1648 = vmatpush.msra.mxu0 %v112
    %1649 = vmatmul.f32.gmra.mxu0 %v1631
    %v1650 = vpop.f32.mrf.mxu0
    %v1651 = vadd.f32 %v1626, %v1650
    %1652 = vdwg.mxu0
    %v1653 = vadd.f32 %v1651, %v254
    %v1654 = vxor.u32 %v1653, 2147483648
    %v1655 = vmul.f32 %v1654, 1.442695
    %v1656 = vpow.pop %v1655
    %v1657 = vadd.f32 %v1656, 1.0
    %v1658 = vrcp.pop %v1657
    %v1659 = vmul.f32 %v1657, %v1658
    %v1660 = vsub.f32 1.0, %v1659
    %v1661 = vmul.f32 %v1658, %v1660
    %v1662 = vadd.f32 %v1658, %v1661
    %vm1663 = vweird.f32 %v1657
    %vm1664 = vweird.f32 %v1658
    %vm1665 = vmor %vm1663, %vm1664
    %v1666 = vsel %vm1665, %v1658, %v1662
    %v1667 = vand.u32 2147483647, %v1657
    %vm1668 = vcmp.eq.f32.partialorder %v1667, 8.507059e+37
    %v1669 = vand.u32 %v1657, 2147483648
    %v1670 = vor.u32 1.1754944e-38, %v1669
    %v1671 = vsel %vm1668, %v1670, %v1666
    %v1672 = vmul.f32 1.0, %v1671
    %v1673 = vtanh.pop %v1653
    %v1674 = vmul.f32 %v1672, %v1499
    %1676 = vrot.lane.b32.xlu0 %v1673, 64
    %v1677 = vpop.permute.xlu0 %1676
    %v1679 = vmul.f32 %v1672, %v1677
    %1681 = vrot.lane.b32.xlu0 %v1679, 32
    %v1682 = vpop.permute.xlu0 %1681
    %v1684 = vadd.f32 %v1674, %v1682
    %v1685 = vtanh.pop %v1684
    %1687 = vrot.lane.b32.xlu0 %v1685, 64
    %v1688 = vpop.permute.xlu0 %1687
    %v1690 = vmul.f32 %v1672, %v1688
    %v1691 = vmul.f32 %v1592, %v1690
    %1693 = vrot.lane.b32.xlu0 %v1691, 32
    %v1694 = vpop.permute.xlu0 %1693
    %v1695 = vsel %vm130, %v1694, 0
    %1697 = vmatpush.msra.mxu0 0.0
    %1698 = vmatpush.msra.mxu0 0.0
    %1699 = vmatpush.msra.mxu0 0.0
    %1700 = vmatpush.msra.mxu0 0.0
    %1701 = vmatpush.msra.mxu0 0.0
    %1702 = vmatpush.msra.mxu0 0.0
    %1703 = vmatpush.msra.mxu0 0.0
    %1704 = vmatpush.msra.mxu0 0.0
    %1705 = vmatpush.msra.mxu0 0.0
    %1706 = vmatpush.msra.mxu0 0.0
    %1707 = vmatpush.msra.mxu0 0.0
    %1708 = vmatpush.msra.mxu0 0.0
    %1709 = vmatpush.msra.mxu0 %v124
    %1710 = vmatpush.msra.mxu0 %v123
    %1711 = vmatpush.msra.mxu0 %v122
    %1712 = vmatpush.msra.mxu0 %v121
    %1713 = vmatmul.f32.gmra.mxu0 %v1695
    %v1714 = vpop.f32.mrf.mxu0
    %v1715 = vadd.f32 %v299, %v1714
    %1716 = vdwg.mxu0
    %s1717 = scalar_lea.vmem [#allocation11], 56
    %1718 = vst [vmem:[%s1717] sm:$0xff] %v1715
    // Predicated region
    $region54: #{tpu_custom_call.1} parent=1 // pred_check
      _
    $region55: #{tpu_custom_call.1} parent=1 // pred_check_branch
      %1720 = sbr.rel (0) target = $region57
    $region56: #{tpu_custom_call.1} parent=1 // pred_region
      %1722 = vsyncadd [#allocation4], 0
      %s1723 = sshll.u32 [#allocation11], 4
      %s1724 = int_to_ptr.vmem [resolvable:$true] %s1723
      %s1725 = sshll.u32 %s8, 4
      %s1726 = int_to_ptr.hbm [resolvable:$true] %s1725
      %1731 = dma.vmem_to_hbm [thread:$0]  %s1724, 1024, %s1726, [#allocation4], 128, 128, 8
    $region57: #{tpu_custom_call.1} parent=1 // pred_fallthru
      _
    // Predicated region
    $region58: #{tpu_custom_call.1} parent=1 // pred_check
      _
    $region59: #{tpu_custom_call.1} parent=1 // pred_check_branch
      %1733 = sbr.rel (0) target = $region61
    $region60: #{tpu_custom_call.1} parent=1 // pred_region
      %1735 = dma.done [#allocation4], 1024
    $region61: #{tpu_custom_call.1} parent=1 // pred_fallthru
      _
    %1736 = vsyncpa [#allocation3], 1
    %1737 = vsyncpa [#allocation6], 1
    %1738 = vsyncpa [#allocation9], 1
    %1739 = vsyncpa [#allocation4], 1

</llo_original>
